<compile_context>
chip_gen: v7x
topology: tpu7x:2x2x1
jax: 0.10.0
libtpu: 0.0.40
codegen_flags: <defaults>
</compile_context>

<pallas_src>
import functools

import jax
import jax.numpy as jnp
from jax import lax
from jax.experimental import pallas as pl
from jax.experimental.pallas import tpu as pltpu


def bottleneck_kernel(x_ref, w1_ref, b1_ref, w3_ref, b3_ref, w2_ref, b2_ref,
                      o_ref, pad_ref, col_ref):
    # x_ref  : (1, H+2, W, C)  H-zero-padded input, resident across row tiles
    # w1     : (C, Cm)         b1: (1, Cm)     (BN folded)
    # w3     : (9*Cm, Cm)      b3: (1, Cm)     (3x3 weights, im2col layout)
    # w2     : (Cm, C)         b2: (1, C)
    # o_ref  : (1, TH, W, C)   output row tile
    # pad_ref: (TH+2, W+2, Cm) f32 scratch (W-padded conv1 acts incl. row halo)
    # col_ref: (TH*W, 9*Cm)    f32 scratch (im2col matrix)
    _, TH, W, C = o_ref.shape
    H = x_ref.shape[1] - 2
    Cm = w1_ref.shape[1]
    cdt = w1_ref.dtype                       # matmul operand dtype (f32 / bf16)

    t = pl.program_id(1)
    row0 = pl.multiple_of(t * TH, TH)        # top halo row in H-padded coords

    # ---- ConvBnAct #1: 1x1 conv (pure channel matmul) on TH + 2 halo rows ----
    xt = x_ref[:, pl.ds(row0, TH + 2), :, :]                # (1, TH+2, W, C)
    xm = xt.reshape((TH + 2) * W, C)
    h1 = jnp.maximum(
        jnp.dot(xm.astype(cdt), w1_ref[...],
                preferred_element_type=jnp.float32) + b1_ref[...], 0.0)

    # Rows that correspond to the image's zero padding (padded row 0 / H+1)
    # must be zero in h1 (conv1 of a zero-pad row is relu(b1), not 0).
    # Flattened row q maps to padded row row0 + q // W; valid iff in [1, H].
    q = lax.broadcasted_iota(jnp.int32, ((TH + 2) * W, 1), 0)
    valid = (q >= (1 - row0) * W) & (q < (H + 1 - row0) * W)
    h1 = jnp.where(valid, h1, 0.0)

    # ---- W-padded h1 tile: interior is fully overwritten each step, so only
    # the two zero-pad columns need explicit zeros (cheap, per-step-safe). ----
    pad_ref[:, 0:1, :] = jnp.zeros((TH + 2, 1, Cm), dtype=pad_ref.dtype)
    pad_ref[:, W + 1:W + 2, :] = jnp.zeros((TH + 2, 1, Cm), dtype=pad_ref.dtype)
    pad_ref[:, 1:W + 1, :] = h1.reshape(TH + 2, W, Cm)

    # ---- ConvBnAct #2: 3x3 conv (padding=1) as ONE deep-K matmul (im2col) ----
    for tap in range(9):                     # static; each slice dies after its store
        dh, dw = tap // 3, tap % 3
        col_ref[:, tap * Cm:(tap + 1) * Cm] = (
            pad_ref[dh:dh + TH, dw:dw + W, :].reshape(TH * W, Cm))
    h2 = jnp.maximum(
        jnp.dot(col_ref[...].astype(cdt), w3_ref[...],
                preferred_element_type=jnp.float32) + b3_ref[...], 0.0)

    # ---- ConvBnAct #3: 1x1 conv back to C ----
    h3 = jnp.maximum(
        jnp.dot(h2.astype(cdt), w2_ref[...],
                preferred_element_type=jnp.float32) + b2_ref[...], 0.0)

    # ---- DropPath is identity at inference; residual add in f32 ----
    res = xt[0, 1:TH + 1].reshape(TH * W, C)
    o_ref[0] = (h3 + res).reshape(TH, W, C).astype(o_ref.dtype)


@functools.partial(jax.jit, static_argnames=("tile_h", "compute_dtype"))
def bottleneck_forward(x, w1, b1, w3, b3, w2, b2, *, tile_h=8,
                       compute_dtype=jnp.float32):
    """Fused BottleNeck forward. x: (N, H, W, C) NHWC, BN already folded."""
    N, H, W, C = x.shape
    Cm = w1.shape[1]
    if w2.shape[1] != C:
        raise ValueError("residual requires out_features == in_features")
    if H % tile_h != 0:
        raise ValueError(f"H={H} must be divisible by tile_h={tile_h}")
    TH = tile_h
    nT = H // TH

    cdt = jnp.dtype(compute_dtype)
    # Weights feed the MXU in compute_dtype (bf16 on v6e/v7x); biases, ReLU and
    # the residual stay in f32.
    w1c, w3c, w2c = (w.astype(cdt) for w in (w1, w3, w2))
    b1f, b3f, b2f = (b.astype(jnp.float32) for b in (b1, b3, b2))

    # Zero-pad H by 1 on each side so every row tile reads its two halo rows
    # with a plain dynamic slice (halo conv1 rows are recomputed in-kernel and
    # the pad rows masked to zero there).
    x_pad = jnp.pad(x, ((0, 0), (1, 1), (0, 0), (0, 0)))

    return pl.pallas_call(
        bottleneck_kernel,
        out_shape=jax.ShapeDtypeStruct((N, H, W, C), x.dtype),
        grid_spec=pltpu.PrefetchScalarGridSpec(
            num_scalar_prefetch=0,
            grid=(N, nT),
            in_specs=[
                pl.BlockSpec((1, H + 2, W, C), lambda n, t: (n, 0, 0, 0)),
                pl.BlockSpec((C, Cm), lambda n, t: (0, 0)),
                pl.BlockSpec((1, Cm), lambda n, t: (0, 0)),
                pl.BlockSpec((9 * Cm, Cm), lambda n, t: (0, 0)),
                pl.BlockSpec((1, Cm), lambda n, t: (0, 0)),
                pl.BlockSpec((Cm, C), lambda n, t: (0, 0)),
                pl.BlockSpec((1, C), lambda n, t: (0, 0)),
            ],
            out_specs=pl.BlockSpec((1, TH, W, C), lambda n, t: (n, t, 0, 0)),
            scratch_shapes=[
                pltpu.VMEM((TH + 2, W + 2, Cm), jnp.float32),
                pltpu.VMEM((TH * W, 9 * Cm), jnp.float32),
            ],
        ),
        compiler_params=pltpu.CompilerParams(
            dimension_semantics=("parallel", "parallel"),
            vmem_limit_bytes=32 * 1024 * 1024),
    )(x_pad, w1c, b1f, w3c, b3f, w2c, b2f)


def fold_bn(w, b, gamma, beta, mean, var, eps=1e-5):
    """Fold BatchNorm into a conv. w: (..., Cin, Cout), b/gamma/...: (Cout,)."""
    s = gamma / jnp.sqrt(var + eps)
    return w * s, (b - mean) * s + beta


def make_params(key, in_features, out_features, reduction=4):
    cm = out_features // reduction
    keys = jax.random.split(key, 9)

    def conv_w(k, kh, kw, ci, co):
        return jax.random.normal(k, (kh, kw, ci, co), jnp.float32) * 0.1

    def bn(k, c):
        g = 1.0 + 0.1 * jax.random.normal(k, (c,), jnp.float32)
        b = 0.1 * jax.random.normal(jax.random.fold_in(k, 1), (c,), jnp.float32)
        m = 0.1 * jax.random.normal(jax.random.fold_in(k, 2), (c,), jnp.float32)
        v = jnp.abs(jax.random.normal(jax.random.fold_in(k, 3), (c,), jnp.float32)) + 0.5
        return g, b, m, v

    # ConvBnAct 1: 1x1, in -> cm
    w1_f, b1_f = fold_bn(conv_w(keys[0], 1, 1, in_features, cm),
                         0.1 * jax.random.normal(keys[1], (cm,), jnp.float32),
                         *bn(keys[2], cm))
    w1 = w1_f[0, 0]                                   # (Cin, Cm)

    # ConvBnAct 2: 3x3, cm -> cm
    w3_f, b3_f = fold_bn(conv_w(keys[3], 3, 3, cm, cm),
                         0.1 * jax.random.normal(keys[4], (cm,), jnp.float32),
                         *bn(keys[5], cm))
    w3 = w3_f.reshape(9 * cm, cm)                     # im2col layout, tap-major

    # ConvBnAct 3: 1x1, cm -> out
    w2_f, b2_f = fold_bn(conv_w(keys[6], 1, 1, cm, out_features),
                         0.1 * jax.random.normal(keys[7], (out_features,), jnp.float32),
                         *bn(keys[8], out_features))
    w2 = w2_f[0, 0]                                   # (Cm, Cout)

    return (w1, b1_f.reshape(1, cm), w3, b3_f.reshape(1, cm),
            w2, b2_f.reshape(1, out_features))


def reference_forward(x, w1, b1, w3, b3, w2, b2):
    """Pure-JAX (NHWC, f32) reference of the same fused-BN BottleNeck forward."""
    N, H, W, C = x.shape
    Cm = w1.shape[1]
    h1 = jax.nn.relu(jnp.einsum("nhwc,cd->nhwd", x, w1) + b1[0])
    hp = jnp.pad(h1, ((0, 0), (1, 1), (1, 1), (0, 0)))
    w3t = w3.reshape(9, Cm, Cm)
    acc = jnp.broadcast_to(b3[0], (N, H, W, Cm))
    for tap in range(9):
        dh, dw = tap // 3, tap % 3
        acc = acc + jnp.einsum("nhwc,cd->nhwd",
                               hp[:, dh:dh + H, dw:dw + W, :], w3t[tap])
    h2 = jax.nn.relu(acc)
    h3 = jax.nn.relu(jnp.einsum("nhwc,cd->nhwd", h2, w2) + b2[0])
    # DropPath is identity at inference time (module.training == False).
    return h3 + x


if __name__ == "__main__":
    key = jax.random.PRNGKey(0)
    kx, kp = jax.random.split(key)

    # Small but lane-dense demo shapes (channels are multiples of the 128-lane
    # vreg width); in_features == out_features is required by the residual.
    N, H, W, C = 2, 16, 16, 128
    x = jax.random.normal(kx, (N, H, W, C), jnp.float32)    # NHWC

    params = make_params(kp, in_features=C, out_features=C, reduction=4)
    ref = reference_forward(x, *params)

    # f32 path.
    out = bottleneck_forward(x, *params, tile_h=8, compute_dtype=jnp.float32)
    out = jax.block_until_ready(out)
    assert out.shape == (N, H, W, C)
    assert jnp.allclose(out, ref, atol=1e-3, rtol=1e-3), "f32 kernel mismatch vs reference"

    # bf16 matmul-operand path (f32 accumulation) -- the v6e/v7x fast path.
    out_bf16 = bottleneck_forward(x, *params, tile_h=8, compute_dtype=jnp.bfloat16)
    out_bf16 = jax.block_until_ready(out_bf16)
    assert jnp.allclose(out_bf16, ref, atol=1e-1, rtol=1e-1), "bf16 kernel mismatch vs reference"

    print("KERNEL_OK")
</pallas_src>

<mosaic_0001>
module attributes {stable_mosaic.version = 11 : i64} {
  func.func @bottleneck_kernel(%arg0: i32, %arg1: i32, %arg2: memref<1x18x16x128xf32, #tpu.memory_space<vmem>>, %arg3: memref<128x32xf32, #tpu.memory_space<vmem>>, %arg4: memref<1x32xf32, #tpu.memory_space<vmem>>, %arg5: memref<288x32xf32, #tpu.memory_space<vmem>>, %arg6: memref<1x32xf32, #tpu.memory_space<vmem>>, %arg7: memref<32x128xf32, #tpu.memory_space<vmem>>, %arg8: memref<1x128xf32, #tpu.memory_space<vmem>>, %arg9: memref<1x8x16x128xf32, #tpu.memory_space<vmem>>, %arg10: memref<10x18x32xf32, #tpu.memory_space<vmem>>, %arg11: memref<128x288xf32, #tpu.memory_space<vmem>>) attributes {dimension_semantics = [#tpu.dimension_semantics<parallel>, #tpu.dimension_semantics<parallel>], iteration_bounds = array<i64: 2, 2>, scalar_prefetch = 0 : i64, scratch_operands = 2 : i64, tpu.core_type = #tpu.core_type<tc>, window_params = [{transform_indices = @transform_0, window_bounds = array<i64: 1, 18, 16, 128>}, {pipeline_mode = #tpu.pipeline_mode<synchronous>, transform_indices = @transform_1, window_bounds = array<i64: 128, 32>}, {pipeline_mode = #tpu.pipeline_mode<synchronous>, transform_indices = @transform_2, window_bounds = array<i64: 1, 32>}, {pipeline_mode = #tpu.pipeline_mode<synchronous>, transform_indices = @transform_3, window_bounds = array<i64: 288, 32>}, {pipeline_mode = #tpu.pipeline_mode<synchronous>, transform_indices = @transform_4, window_bounds = array<i64: 1, 32>}, {pipeline_mode = #tpu.pipeline_mode<synchronous>, transform_indices = @transform_5, window_bounds = array<i64: 32, 128>}, {pipeline_mode = #tpu.pipeline_mode<synchronous>, transform_indices = @transform_6, window_bounds = array<i64: 1, 128>}, {transform_indices = @transform_7, window_bounds = array<i64: 1, 8, 16, 128>}]} {
    %c8_i32 = arith.constant 8 : i32
    %0 = arith.muli %arg1, %c8_i32 : i32
    %1 = tpu.assume_multiple %0, 8 : i32
    %c0 = arith.constant 0 : index
    %2 = arith.index_cast %1 : i32 to index
    %c0_0 = arith.constant 0 : index
    %c0_1 = arith.constant 0 : index
    %3 = vector.load %arg2[%c0, %2, %c0_0, %c0_1] : memref<1x18x16x128xf32, #tpu.memory_space<vmem>>, vector<1x10x16x128xf32>
    %4 = vector.shape_cast %3 : vector<1x10x16x128xf32> to vector<160x128xf32>
    %c0_2 = arith.constant 0 : index
    %c0_3 = arith.constant 0 : index
    %5 = vector.load %arg3[%c0_2, %c0_3] : memref<128x32xf32, #tpu.memory_space<vmem>>, vector<128x32xf32>
    %cst = arith.constant dense<0.000000e+00> : vector<160x32xf32>
    %6 = tpu.matmul %4, %5, %cst {dimension_numbers = #tpu.dot_dimension_numbers<[1], [0], [0], [1], [0, 0, 1, 1], [], []>} : vector<160x128xf32>, vector<128x32xf32>, vector<160x32xf32> -> vector<160x32xf32>
    %c0_4 = arith.constant 0 : index
    %c0_5 = arith.constant 0 : index
    %7 = vector.load %arg4[%c0_4, %c0_5] : memref<1x32xf32, #tpu.memory_space<vmem>>, vector<1x32xf32>
    %8 = vector.broadcast %7 : vector<1x32xf32> to vector<160x32xf32>
    %9 = arith.addf %6, %8 : vector<160x32xf32>
    %cst_6 = arith.constant 0.000000e+00 : f32
    %10 = vector.broadcast %cst_6 : f32 to vector<160x32xf32>
    %11 = arith.maximumf %9, %10 : vector<160x32xf32>
    %12 = tpu.iota {dimensions = array<i32: 0>} : vector<160x1xi32>
    %c1_i32 = arith.constant 1 : i32
    %13 = arith.subi %c1_i32, %1 : i32
    %c16_i32 = arith.constant 16 : i32
    %14 = arith.muli %13, %c16_i32 : i32
    %15 = vector.broadcast %14 : i32 to vector<160x1xi32>
    %16 = arith.cmpi sge, %12, %15 : vector<160x1xi32>
    %c17_i32 = arith.constant 17 : i32
    %17 = arith.subi %c17_i32, %1 : i32
    %c16_i32_7 = arith.constant 16 : i32
    %18 = arith.muli %17, %c16_i32_7 : i32
    %19 = vector.broadcast %18 : i32 to vector<160x1xi32>
    %20 = arith.cmpi slt, %12, %19 : vector<160x1xi32>
    %21 = arith.andi %16, %20 : vector<160x1xi1>
    %cst_8 = arith.constant 0.000000e+00 : f32
    %22 = vector.shape_cast %21 : vector<160x1xi1> to vector<160x1xi1>
    %23 = vector.broadcast %22 : vector<160x1xi1> to vector<160x32xi1>
    %24 = vector.broadcast %cst_8 : f32 to vector<160x32xf32>
    %25 = arith.select %23, %11, %24 : vector<160x32xi1>, vector<160x32xf32>
    %cst_9 = arith.constant 0.000000e+00 : f32
    %26 = vector.broadcast %cst_9 : f32 to vector<10x1x32xf32>
    %c0_10 = arith.constant 0 : index
    %c0_11 = arith.constant 0 : index
    %c0_12 = arith.constant 0 : index
    %27 = vector.load %arg10[%c0_10, %c0_11, %c0_12] : memref<10x18x32xf32, #tpu.memory_space<vmem>>, vector<10x1x32xf32>
    tpu.vector_store %arg10[%c0_10, %c0_11, %c0_12], %26 {strides = array<i32>} : memref<10x18x32xf32, #tpu.memory_space<vmem>>, vector<10x1x32xf32>,
    %cst_13 = arith.constant 0.000000e+00 : f32
    %28 = vector.broadcast %cst_13 : f32 to vector<10x1x32xf32>
    %c0_14 = arith.constant 0 : index
    %c17 = arith.constant 17 : index
    %c0_15 = arith.constant 0 : index
    %29 = vector.load %arg10[%c0_14, %c17, %c0_15] : memref<10x18x32xf32, #tpu.memory_space<vmem>>, vector<10x1x32xf32>
    tpu.vector_store %arg10[%c0_14, %c17, %c0_15], %28 {strides = array<i32>} : memref<10x18x32xf32, #tpu.memory_space<vmem>>, vector<10x1x32xf32>,
    %30 = vector.shape_cast %25 : vector<160x32xf32> to vector<10x16x32xf32>
    %c0_16 = arith.constant 0 : index
    %c1 = arith.constant 1 : index
    %c0_17 = arith.constant 0 : index
    %31 = vector.load %arg10[%c0_16, %c1, %c0_17] : memref<10x18x32xf32, #tpu.memory_space<vmem>>, vector<10x16x32xf32>
    tpu.vector_store %arg10[%c0_16, %c1, %c0_17], %30 {strides = array<i32>} : memref<10x18x32xf32, #tpu.memory_space<vmem>>, vector<10x16x32xf32>,
    %c0_18 = arith.constant 0 : index
    %c0_19 = arith.constant 0 : index
    %c0_20 = arith.constant 0 : index
    %32 = vector.load %arg10[%c0_18, %c0_19, %c0_20] : memref<10x18x32xf32, #tpu.memory_space<vmem>>, vector<8x16x32xf32>
    %33 = vector.shape_cast %32 : vector<8x16x32xf32> to vector<128x32xf32>
    %c0_21 = arith.constant 0 : index
    %c0_22 = arith.constant 0 : index
    %34 = vector.load %arg11[%c0_21, %c0_22] : memref<128x288xf32, #tpu.memory_space<vmem>>, vector<128x32xf32>
    tpu.vector_store %arg11[%c0_21, %c0_22], %33 {strides = array<i32>} : memref<128x288xf32, #tpu.memory_space<vmem>>, vector<128x32xf32>,
    %c0_23 = arith.constant 0 : index
    %c1_24 = arith.constant 1 : index
    %c0_25 = arith.constant 0 : index
    %35 = vector.load %arg10[%c0_23, %c1_24, %c0_25] : memref<10x18x32xf32, #tpu.memory_space<vmem>>, vector<8x16x32xf32>
    %36 = vector.shape_cast %35 : vector<8x16x32xf32> to vector<128x32xf32>
    %c0_26 = arith.constant 0 : index
    %c32 = arith.constant 32 : index
    %37 = vector.load %arg11[%c0_26, %c32] : memref<128x288xf32, #tpu.memory_space<vmem>>, vector<128x32xf32>
    tpu.vector_store %arg11[%c0_26, %c32], %36 {strides = array<i32>} : memref<128x288xf32, #tpu.memory_space<vmem>>, vector<128x32xf32>,
    %c0_27 = arith.constant 0 : index
    %c2 = arith.constant 2 : index
    %c0_28 = arith.constant 0 : index
    %38 = vector.load %arg10[%c0_27, %c2, %c0_28] : memref<10x18x32xf32, #tpu.memory_space<vmem>>, vector<8x16x32xf32>
    %39 = vector.shape_cast %38 : vector<8x16x32xf32> to vector<128x32xf32>
    %c0_29 = arith.constant 0 : index
    %c64 = arith.constant 64 : index
    %40 = vector.load %arg11[%c0_29, %c64] : memref<128x288xf32, #tpu.memory_space<vmem>>, vector<128x32xf32>
    tpu.vector_store %arg11[%c0_29, %c64], %39 {strides = array<i32>} : memref<128x288xf32, #tpu.memory_space<vmem>>, vector<128x32xf32>,
    %c1_30 = arith.constant 1 : index
    %c0_31 = arith.constant 0 : index
    %c0_32 = arith.constant 0 : index
    %41 = vector.load %arg10[%c1_30, %c0_31, %c0_32] : memref<10x18x32xf32, #tpu.memory_space<vmem>>, vector<8x16x32xf32>
    %42 = vector.shape_cast %41 : vector<8x16x32xf32> to vector<128x32xf32>
    %c0_33 = arith.constant 0 : index
    %c96 = arith.constant 96 : index
    %43 = vector.load %arg11[%c0_33, %c96] : memref<128x288xf32, #tpu.memory_space<vmem>>, vector<128x32xf32>
    tpu.vector_store %arg11[%c0_33, %c96], %42 {strides = array<i32>} : memref<128x288xf32, #tpu.memory_space<vmem>>, vector<128x32xf32>,
    %c1_34 = arith.constant 1 : index
    %c1_35 = arith.constant 1 : index
    %c0_36 = arith.constant 0 : index
    %44 = vector.load %arg10[%c1_34, %c1_35, %c0_36] : memref<10x18x32xf32, #tpu.memory_space<vmem>>, vector<8x16x32xf32>
    %45 = vector.shape_cast %44 : vector<8x16x32xf32> to vector<128x32xf32>
    %c0_37 = arith.constant 0 : index
    %c128 = arith.constant 128 : index
    %46 = vector.load %arg11[%c0_37, %c128] : memref<128x288xf32, #tpu.memory_space<vmem>>, vector<128x32xf32>
    tpu.vector_store %arg11[%c0_37, %c128], %45 {strides = array<i32>} : memref<128x288xf32, #tpu.memory_space<vmem>>, vector<128x32xf32>,
    %c1_38 = arith.constant 1 : index
    %c2_39 = arith.constant 2 : index
    %c0_40 = arith.constant 0 : index
    %47 = vector.load %arg10[%c1_38, %c2_39, %c0_40] : memref<10x18x32xf32, #tpu.memory_space<vmem>>, vector<8x16x32xf32>
    %48 = vector.shape_cast %47 : vector<8x16x32xf32> to vector<128x32xf32>
    %c0_41 = arith.constant 0 : index
    %c160 = arith.constant 160 : index
    %49 = vector.load %arg11[%c0_41, %c160] : memref<128x288xf32, #tpu.memory_space<vmem>>, vector<128x32xf32>
    tpu.vector_store %arg11[%c0_41, %c160], %48 {strides = array<i32>} : memref<128x288xf32, #tpu.memory_space<vmem>>, vector<128x32xf32>,
    %c2_42 = arith.constant 2 : index
    %c0_43 = arith.constant 0 : index
    %c0_44 = arith.constant 0 : index
    %50 = vector.load %arg10[%c2_42, %c0_43, %c0_44] : memref<10x18x32xf32, #tpu.memory_space<vmem>>, vector<8x16x32xf32>
    %51 = vector.shape_cast %50 : vector<8x16x32xf32> to vector<128x32xf32>
    %c0_45 = arith.constant 0 : index
    %c192 = arith.constant 192 : index
    %52 = vector.load %arg11[%c0_45, %c192] : memref<128x288xf32, #tpu.memory_space<vmem>>, vector<128x32xf32>
    tpu.vector_store %arg11[%c0_45, %c192], %51 {strides = array<i32>} : memref<128x288xf32, #tpu.memory_space<vmem>>, vector<128x32xf32>,
    %c2_46 = arith.constant 2 : index
    %c1_47 = arith.constant 1 : index
    %c0_48 = arith.constant 0 : index
    %53 = vector.load %arg10[%c2_46, %c1_47, %c0_48] : memref<10x18x32xf32, #tpu.memory_space<vmem>>, vector<8x16x32xf32>
    %54 = vector.shape_cast %53 : vector<8x16x32xf32> to vector<128x32xf32>
    %c0_49 = arith.constant 0 : index
    %c224 = arith.constant 224 : index
    %55 = vector.load %arg11[%c0_49, %c224] : memref<128x288xf32, #tpu.memory_space<vmem>>, vector<128x32xf32>
    tpu.vector_store %arg11[%c0_49, %c224], %54 {strides = array<i32>} : memref<128x288xf32, #tpu.memory_space<vmem>>, vector<128x32xf32>,
    %c2_50 = arith.constant 2 : index
    %c2_51 = arith.constant 2 : index
    %c0_52 = arith.constant 0 : index
    %56 = vector.load %arg10[%c2_50, %c2_51, %c0_52] : memref<10x18x32xf32, #tpu.memory_space<vmem>>, vector<8x16x32xf32>
    %57 = vector.shape_cast %56 : vector<8x16x32xf32> to vector<128x32xf32>
    %c0_53 = arith.constant 0 : index
    %c256 = arith.constant 256 : index
    %58 = vector.load %arg11[%c0_53, %c256] : memref<128x288xf32, #tpu.memory_space<vmem>>, vector<128x32xf32>
    tpu.vector_store %arg11[%c0_53, %c256], %57 {strides = array<i32>} : memref<128x288xf32, #tpu.memory_space<vmem>>, vector<128x32xf32>,
    %c0_54 = arith.constant 0 : index
    %c0_55 = arith.constant 0 : index
    %59 = vector.load %arg11[%c0_54, %c0_55] : memref<128x288xf32, #tpu.memory_space<vmem>>, vector<128x288xf32>
    %c0_56 = arith.constant 0 : index
    %c0_57 = arith.constant 0 : index
    %60 = vector.load %arg5[%c0_56, %c0_57] : memref<288x32xf32, #tpu.memory_space<vmem>>, vector<288x32xf32>
    %cst_58 = arith.constant dense<0.000000e+00> : vector<128x32xf32>
    %61 = tpu.matmul %59, %60, %cst_58 {dimension_numbers = #tpu.dot_dimension_numbers<[1], [0], [0], [1], [0, 0, 1, 1], [], []>} : vector<128x288xf32>, vector<288x32xf32>, vector<128x32xf32> -> vector<128x32xf32>
    %c0_59 = arith.constant 0 : index
    %c0_60 = arith.constant 0 : index
    %62 = vector.load %arg6[%c0_59, %c0_60] : memref<1x32xf32, #tpu.memory_space<vmem>>, vector<1x32xf32>
    %63 = vector.broadcast %62 : vector<1x32xf32> to vector<128x32xf32>
    %64 = arith.addf %61, %63 : vector<128x32xf32>
    %cst_61 = arith.constant 0.000000e+00 : f32
    %65 = vector.broadcast %cst_61 : f32 to vector<128x32xf32>
    %66 = arith.maximumf %64, %65 : vector<128x32xf32>
    %c0_62 = arith.constant 0 : index
    %c0_63 = arith.constant 0 : index
    %67 = vector.load %arg7[%c0_62, %c0_63] : memref<32x128xf32, #tpu.memory_space<vmem>>, vector<32x128xf32>
    %cst_64 = arith.constant dense<0.000000e+00> : vector<128x128xf32>
    %68 = tpu.matmul %66, %67, %cst_64 {dimension_numbers = #tpu.dot_dimension_numbers<[1], [0], [0], [1], [0, 0, 1, 1], [], []>} : vector<128x32xf32>, vector<32x128xf32>, vector<128x128xf32> -> vector<128x128xf32>
    %c0_65 = arith.constant 0 : index
    %c0_66 = arith.constant 0 : index
    %69 = vector.load %arg8[%c0_65, %c0_66] : memref<1x128xf32, #tpu.memory_space<vmem>>, vector<1x128xf32>
    %70 = vector.broadcast %69 : vector<1x128xf32> to vector<128x128xf32>
    %71 = arith.addf %68, %70 : vector<128x128xf32>
    %cst_67 = arith.constant 0.000000e+00 : f32
    %72 = vector.broadcast %cst_67 : f32 to vector<128x128xf32>
    %73 = arith.maximumf %71, %72 : vector<128x128xf32>
    %74 = vector.extract_strided_slice %3 {offsets = [0, 1, 0, 0], sizes = [1, 8, 16, 128], strides = [1, 1, 1, 1]} : vector<1x10x16x128xf32> to vector<1x8x16x128xf32>
    %75 = vector.shape_cast %74 : vector<1x8x16x128xf32> to vector<8x16x128xf32>
    %76 = vector.shape_cast %75 : vector<8x16x128xf32> to vector<128x128xf32>
    %77 = arith.addf %73, %76 : vector<128x128xf32>
    %78 = vector.shape_cast %77 : vector<128x128xf32> to vector<8x16x128xf32>
    %c0_68 = arith.constant 0 : index
    %c0_69 = arith.constant 0 : index
    %c0_70 = arith.constant 0 : index
    %c0_71 = arith.constant 0 : index
    %79 = vector.load %arg9[%c0_68, %c0_69, %c0_70, %c0_71] : memref<1x8x16x128xf32, #tpu.memory_space<vmem>>, vector<1x8x16x128xf32>
    %80 = vector.shape_cast %79 : vector<1x8x16x128xf32> to vector<8x16x128xf32>
    %81 = vector.shape_cast %78 : vector<8x16x128xf32> to vector<1x8x16x128xf32>
    tpu.vector_store %arg9[%c0_68, %c0_69, %c0_70, %c0_71], %81 {strides = array<i32>} : memref<1x8x16x128xf32, #tpu.memory_space<vmem>>, vector<1x8x16x128xf32>,
    return
  }
  func.func @transform_0(%arg0: i32, %arg1: i32) -> (i32, i32, i32, i32) {
    %c0_i32 = arith.constant 0 : i32
    %c0_i32_0 = arith.constant 0 : i32
    %c0_i32_1 = arith.constant 0 : i32
    %c0_i32_2 = arith.constant 0 : i32
    return %arg0, %c0_i32, %c0_i32_0, %c0_i32_1 : i32, i32, i32, i32
  }
  func.func @transform_1(%arg0: i32, %arg1: i32) -> (i32, i32) {
    %c0_i32 = arith.constant 0 : i32
    %c0_i32_0 = arith.constant 0 : i32
    %c0_i32_1 = arith.constant 0 : i32
    return %c0_i32, %c0_i32_0 : i32, i32
  }
  func.func @transform_2(%arg0: i32, %arg1: i32) -> (i32, i32) {
    %c0_i32 = arith.constant 0 : i32
    %c0_i32_0 = arith.constant 0 : i32
    %c0_i32_1 = arith.constant 0 : i32
    return %c0_i32, %c0_i32_0 : i32, i32
  }
  func.func @transform_3(%arg0: i32, %arg1: i32) -> (i32, i32) {
    %c0_i32 = arith.constant 0 : i32
    %c0_i32_0 = arith.constant 0 : i32
    %c0_i32_1 = arith.constant 0 : i32
    return %c0_i32, %c0_i32_0 : i32, i32
  }
  func.func @transform_4(%arg0: i32, %arg1: i32) -> (i32, i32) {
    %c0_i32 = arith.constant 0 : i32
    %c0_i32_0 = arith.constant 0 : i32
    %c0_i32_1 = arith.constant 0 : i32
    return %c0_i32, %c0_i32_0 : i32, i32
  }
  func.func @transform_5(%arg0: i32, %arg1: i32) -> (i32, i32) {
    %c0_i32 = arith.constant 0 : i32
    %c0_i32_0 = arith.constant 0 : i32
    %c0_i32_1 = arith.constant 0 : i32
    return %c0_i32, %c0_i32_0 : i32, i32
  }
  func.func @transform_6(%arg0: i32, %arg1: i32) -> (i32, i32) {
    %c0_i32 = arith.constant 0 : i32
    %c0_i32_0 = arith.constant 0 : i32
    %c0_i32_1 = arith.constant 0 : i32
    return %c0_i32, %c0_i32_0 : i32, i32
  }
  func.func @transform_7(%arg0: i32, %arg1: i32) -> (i32, i32, i32, i32) {
    %c0_i32 = arith.constant 0 : i32
    %c0_i32_0 = arith.constant 0 : i32
    %c0_i32_1 = arith.constant 0 : i32
    return %arg0, %arg1, %c0_i32, %c0_i32_0 : i32, i32, i32, i32
  }
}

</mosaic_0001>

<llo_original>
// kernel: bottleneck_forward.1
$region0: #{bottleneck_forward.1}
  #allocation0 [shape = 'u32[]', space=smem, size = 0x4, offset = 0x4, fixed_abs, tag = 'smem constant byte address 0x4 - core index']
  #allocation1 [shape = 'u32[144,128]{1,0:T(1,128)}', space=vmem, size = 0x12000, scoped, tag = 'internal scratch']
  #allocation2 [shape = 'f32[10,18,32]{2,1,0:T(8,128)}', space=vmem, size = 0x1e000, scoped, tag = 'scratch operand']
  #allocation3 [shape = 'f32[128,288]{1,0:T(8,128)}', space=vmem, size = 0x30000, scoped, tag = 'scratch operand']
  %s0 = inlined_call_operand.vmem [shape: f32[2,18,16,128], index: 0, kind: input, shape index: {}]
  %s1 = inlined_call_operand.vmem [shape: f32[128,32], index: 1, kind: input, shape index: {}]
  %s2 = inlined_call_operand.vmem [shape: f32[1,32], index: 2, kind: input, shape index: {}]
  %s3 = inlined_call_operand.vmem [shape: f32[288,32], index: 3, kind: input, shape index: {}]
  %s4 = inlined_call_operand.vmem [shape: f32[1,32], index: 4, kind: input, shape index: {}]
  %s5 = inlined_call_operand.vmem [shape: f32[32,128], index: 5, kind: input, shape index: {}]
  %s6 = inlined_call_operand.vmem [shape: f32[1,128], index: 6, kind: input, shape index: {}]
  %s7 = inlined_call_operand.hbm [shape: f32[2,16,16,128], index: 7, kind: output, shape index: {}]
  %s8 = sld [smem:[#allocation0]]
  $region61: #{bottleneck_forward.1} parent=0
    _
  %s10 = ssub.s32 1, %s8
  %s11 = scalar_select 0, %s10, %s8
  $region1: #{bottleneck_forward.1} parent=0
    #allocation4 [shape = 'u8[131072]{0}', space=vmem, size = 0x20000, scoped, tag = 'output window, operand 0']
    #allocation5 [shape = 's32[2]{0}', space=sflag, size = 0x8, scoped, tag = 'scoped memory for bottleneck_forward.1']
    %12 = vsyncpa [#allocation5], 0
    %s13 = scalar_lea.sflag [#allocation5], 1
    %14 = vsyncpa %s13, 0
    loop: start=0, step=1, limit=6
    $region2: #{bottleneck_forward.1} parent=1 // loop_pre_header
      _
    $region3: #{bottleneck_forward.1} parent=1 // loop_header
      %s16 = sphi 0, %s20
      %p17 = scmp.ge.s32.totalorder %s16, 6
      %s23 = sphi 0, %s35
      %s24 = sphi 0, %s31
      %s25 = sphi 0, %s23
      %s26 = sphi 0, %s24
      %s27 = sphi 0, %s25
      %s28 = sphi 0, %s26
      %s38 = sphi 0, %s40
      %s41 = sphi 0, %s38
      %s42 = sphi 0, %s41
      %s58 = sphi 0, %s42
      %s62 = sphi 0, %s62
      %s64 = sphi 0, %s62
      %s65 = sphi 0, %s64
      %s79 = sphi 0, %s65
      %s83 = sphi 0, %s83
      %s85 = sphi 0, %s83
      %s86 = sphi 0, %s85
      %s100 = sphi 0, %s86
      %s104 = sphi 0, %s104
      %s106 = sphi 0, %s104
      %s107 = sphi 0, %s106
      %s121 = sphi 0, %s107
      %s125 = sphi 0, %s125
      %s127 = sphi 0, %s125
      %s128 = sphi 0, %s127
      %s142 = sphi 0, %s128
      %s146 = sphi 0, %s146
      %s148 = sphi 0, %s146
      %s149 = sphi 0, %s148
      %s163 = sphi 0, %s149
      %s167 = sphi 0, %s167
      %s169 = sphi 0, %s167
      %s170 = sphi 0, %s169
      %s184 = sphi 0, %s170
      %s192 = sphi 0, %s194
      %s195 = sphi 0, %s192
      %s196 = sphi 0, %s195
      %s212 = sphi 0, %s196
    $region4: #{bottleneck_forward.1} parent=1 // loop_header_branch
      %19 = sbr.rel (%p17) target = $region8
    $region5: #{bottleneck_forward.1} parent=1 // loop_body
      %s21 = ssub.s32 %s16, 1
      %s22 = ssub.s32 %s16, 2
      %s29 = sadd.s32 1, %s24
      %p30 = scmp.ge.s32.totalorder %s29, 2
      %s31 = scalar_select %p30, 0, %s29
      %s32 = sadd.s32 1, %s23
      %s33 = scalar_select %p30, %s32, %s23
      %p34 = scmp.ge.s32.totalorder %s33, 2
      %s35 = scalar_select %p34, 0, %s33
      %s36 = ssub.s32 %s23, %s35
      %p37 = scmp.eq.s32.totalorder %s36, 0
      %s39 = sadd.s32 %s38, 1
      %s40 = scalar_select %p37, %s38, %s39
      %p43 = pneg %p37
      %p44 = scmp.eq.s32.totalorder %s16, 3
      %p45 = por %p43, %p44
      %p46 = scmp.ne.s32.totalorder %s38, %s41
      %p47 = scmp.eq.s32.totalorder %s16, 0
      %p48 = por %p46, %p47
      %p49 = scmp.ne.s32.totalorder %s38, %s41
      %p50 = scmp.eq.s32.totalorder %s21, 3
      %p51 = por %p49, %p50
      %p52 = scmp.ne.s32.totalorder %s41, %s42
      %p53 = scmp.eq.s32.totalorder %s21, 0
      %p54 = por %p52, %p53
      %p55 = scmp.ne.s32.totalorder %s41, %s42
      %p56 = scmp.eq.s32.totalorder %s22, 3
      %p57 = por %p55, %p56
      %p59 = scmp.ne.s32.totalorder %s42, %s58
      %p60 = scmp.eq.s32.totalorder %s22, 0
      %p61 = por %p59, %p60
      %s63 = sadd.s32 %s62, 1
      %p66 = scmp.eq.s32.totalorder %s16, 3
      %p67 = scmp.ne.s32.totalorder %s62, %s64
      %p68 = scmp.eq.s32.totalorder %s16, 0
      %p69 = por %p67, %p68
      %p70 = scmp.ne.s32.totalorder %s62, %s64
      %p71 = scmp.eq.s32.totalorder %s21, 3
      %p72 = por %p70, %p71
      %p73 = scmp.ne.s32.totalorder %s64, %s65
      %p74 = scmp.eq.s32.totalorder %s21, 0
      %p75 = por %p73, %p74
      %p76 = scmp.ne.s32.totalorder %s64, %s65
      %p77 = scmp.eq.s32.totalorder %s22, 3
      %p78 = por %p76, %p77
      %p80 = scmp.ne.s32.totalorder %s65, %s79
      %p81 = scmp.eq.s32.totalorder %s22, 0
      %p82 = por %p80, %p81
      %s84 = sadd.s32 %s83, 1
      %p87 = scmp.eq.s32.totalorder %s16, 3
      %p88 = scmp.ne.s32.totalorder %s83, %s85
      %p89 = scmp.eq.s32.totalorder %s16, 0
      %p90 = por %p88, %p89
      %p91 = scmp.ne.s32.totalorder %s83, %s85
      %p92 = scmp.eq.s32.totalorder %s21, 3
      %p93 = por %p91, %p92
      %p94 = scmp.ne.s32.totalorder %s85, %s86
      %p95 = scmp.eq.s32.totalorder %s21, 0
      %p96 = por %p94, %p95
      %p97 = scmp.ne.s32.totalorder %s85, %s86
      %p98 = scmp.eq.s32.totalorder %s22, 3
      %p99 = por %p97, %p98
      %p101 = scmp.ne.s32.totalorder %s86, %s100
      %p102 = scmp.eq.s32.totalorder %s22, 0
      %p103 = por %p101, %p102
      %s105 = sadd.s32 %s104, 1
      %p108 = scmp.eq.s32.totalorder %s16, 3
      %p109 = scmp.ne.s32.totalorder %s104, %s106
      %p110 = scmp.eq.s32.totalorder %s16, 0
      %p111 = por %p109, %p110
      %p112 = scmp.ne.s32.totalorder %s104, %s106
      %p113 = scmp.eq.s32.totalorder %s21, 3
      %p114 = por %p112, %p113
      %p115 = scmp.ne.s32.totalorder %s106, %s107
      %p116 = scmp.eq.s32.totalorder %s21, 0
      %p117 = por %p115, %p116
      %p118 = scmp.ne.s32.totalorder %s106, %s107
      %p119 = scmp.eq.s32.totalorder %s22, 3
      %p120 = por %p118, %p119
      %p122 = scmp.ne.s32.totalorder %s107, %s121
      %p123 = scmp.eq.s32.totalorder %s22, 0
      %p124 = por %p122, %p123
      %s126 = sadd.s32 %s125, 1
      %p129 = scmp.eq.s32.totalorder %s16, 3
      %p130 = scmp.ne.s32.totalorder %s125, %s127
      %p131 = scmp.eq.s32.totalorder %s16, 0
      %p132 = por %p130, %p131
      %p133 = scmp.ne.s32.totalorder %s125, %s127
      %p134 = scmp.eq.s32.totalorder %s21, 3
      %p135 = por %p133, %p134
      %p136 = scmp.ne.s32.totalorder %s127, %s128
      %p137 = scmp.eq.s32.totalorder %s21, 0
      %p138 = por %p136, %p137
      %p139 = scmp.ne.s32.totalorder %s127, %s128
      %p140 = scmp.eq.s32.totalorder %s22, 3
      %p141 = por %p139, %p140
      %p143 = scmp.ne.s32.totalorder %s128, %s142
      %p144 = scmp.eq.s32.totalorder %s22, 0
      %p145 = por %p143, %p144
      %s147 = sadd.s32 %s146, 1
      %p150 = scmp.eq.s32.totalorder %s16, 3
      %p151 = scmp.ne.s32.totalorder %s146, %s148
      %p152 = scmp.eq.s32.totalorder %s16, 0
      %p153 = por %p151, %p152
      %p154 = scmp.ne.s32.totalorder %s146, %s148
      %p155 = scmp.eq.s32.totalorder %s21, 3
      %p156 = por %p154, %p155
      %p157 = scmp.ne.s32.totalorder %s148, %s149
      %p158 = scmp.eq.s32.totalorder %s21, 0
      %p159 = por %p157, %p158
      %p160 = scmp.ne.s32.totalorder %s148, %s149
      %p161 = scmp.eq.s32.totalorder %s22, 3
      %p162 = por %p160, %p161
      %p164 = scmp.ne.s32.totalorder %s149, %s163
      %p165 = scmp.eq.s32.totalorder %s22, 0
      %p166 = por %p164, %p165
      %s168 = sadd.s32 %s167, 1
      %p171 = scmp.eq.s32.totalorder %s16, 3
      %p172 = scmp.ne.s32.totalorder %s167, %s169
      %p173 = scmp.eq.s32.totalorder %s16, 0
      %p174 = por %p172, %p173
      %p175 = scmp.ne.s32.totalorder %s167, %s169
      %p176 = scmp.eq.s32.totalorder %s21, 3
      %p177 = por %p175, %p176
      %p178 = scmp.ne.s32.totalorder %s169, %s170
      %p179 = scmp.eq.s32.totalorder %s21, 0
      %p180 = por %p178, %p179
      %p181 = scmp.ne.s32.totalorder %s169, %s170
      %p182 = scmp.eq.s32.totalorder %s22, 3
      %p183 = por %p181, %p182
      %p185 = scmp.ne.s32.totalorder %s170, %s184
      %p186 = scmp.eq.s32.totalorder %s22, 0
      %p187 = por %p185, %p186
      %s188 = ssub.s32 %s23, %s35
      %s189 = ssub.s32 %s24, %s31
      %s190 = sor.u32 %s188, %s189
      %p191 = scmp.eq.s32.totalorder %s190, 0
      %s193 = sadd.s32 %s192, 1
      %s194 = scalar_select %p191, %s192, %s193
      %p197 = pneg %p191
      %p198 = scmp.eq.s32.totalorder %s16, 3
      %p199 = por %p197, %p198
      %p200 = scmp.ne.s32.totalorder %s192, %s195
      %p201 = scmp.eq.s32.totalorder %s16, 0
      %p202 = por %p200, %p201
      %p203 = scmp.ne.s32.totalorder %s192, %s195
      %p204 = scmp.eq.s32.totalorder %s21, 3
      %p205 = por %p203, %p204
      %p206 = scmp.ne.s32.totalorder %s195, %s196
      %p207 = scmp.eq.s32.totalorder %s21, 0
      %p208 = por %p206, %p207
      %p209 = scmp.ne.s32.totalorder %s195, %s196
      %p210 = scmp.eq.s32.totalorder %s22, 3
      %p211 = por %p209, %p210
      %p213 = scmp.ne.s32.totalorder %s196, %s212
      %p214 = scmp.eq.s32.totalorder %s22, 0
      %p215 = por %p213, %p214
      %p216 = scmp.le.s32.totalorder 1, %s16
      %p217 = scmp.lt.s32.totalorder %s16, 5
      %p218 = pnand %p216, %p217
      %p219 = pneg %p218
      // Predicated region
      $region9: #{bottleneck_forward.1} parent=5 // pred_check
        _
      $region10: #{bottleneck_forward.1} parent=5 // pred_check_branch
        %221 = sbr.rel (%p218) target = $region12
      $region11: #{bottleneck_forward.1} parent=5 // pred_region
        %s222 = ssub.s32 %s16, 1
        // Predicated region
        $region13: #{bottleneck_forward.1} parent=11 // pred_check
          %p223 = pneg %p75
        $region14: #{bottleneck_forward.1} parent=11 // pred_check_branch
          %225 = sbr.rel (%p223) target = $region16
        $region15: #{bottleneck_forward.1} parent=11 // pred_region
          _
        $region16: #{bottleneck_forward.1} parent=11 // pred_fallthru
          _
        // Predicated region
        $region17: #{bottleneck_forward.1} parent=11 // pred_check
          %p226 = pneg %p96
        $region18: #{bottleneck_forward.1} parent=11 // pred_check_branch
          %228 = sbr.rel (%p226) target = $region20
        $region19: #{bottleneck_forward.1} parent=11 // pred_region
          _
        $region20: #{bottleneck_forward.1} parent=11 // pred_fallthru
          _
        // Predicated region
        $region21: #{bottleneck_forward.1} parent=11 // pred_check
          %p229 = pneg %p117
        $region22: #{bottleneck_forward.1} parent=11 // pred_check_branch
          %231 = sbr.rel (%p229) target = $region24
        $region23: #{bottleneck_forward.1} parent=11 // pred_region
          _
        $region24: #{bottleneck_forward.1} parent=11 // pred_fallthru
          _
        // Predicated region
        $region25: #{bottleneck_forward.1} parent=11 // pred_check
          %p232 = pneg %p138
        $region26: #{bottleneck_forward.1} parent=11 // pred_check_branch
          %234 = sbr.rel (%p232) target = $region28
        $region27: #{bottleneck_forward.1} parent=11 // pred_region
          _
        $region28: #{bottleneck_forward.1} parent=11 // pred_fallthru
          _
        // Predicated region
        $region29: #{bottleneck_forward.1} parent=11 // pred_check
          %p235 = pneg %p159
        $region30: #{bottleneck_forward.1} parent=11 // pred_check_branch
          %237 = sbr.rel (%p235) target = $region32
        $region31: #{bottleneck_forward.1} parent=11 // pred_region
          _
        $region32: #{bottleneck_forward.1} parent=11 // pred_fallthru
          _
        // Predicated region
        $region33: #{bottleneck_forward.1} parent=11 // pred_check
          %p238 = pneg %p180
        $region34: #{bottleneck_forward.1} parent=11 // pred_check_branch
          %240 = sbr.rel (%p238) target = $region36
        $region35: #{bottleneck_forward.1} parent=11 // pred_region
          _
        $region36: #{bottleneck_forward.1} parent=11 // pred_fallthru
          _
      $region12: #{bottleneck_forward.1} parent=5 // pred_fallthru
        _
      %p241 = scmp.lt.s32.totalorder %s16, 4
      // Predicated region
      $region37: #{bottleneck_forward.1} parent=5 // pred_check
        %p242 = pneg %p241
      $region38: #{bottleneck_forward.1} parent=5 // pred_check_branch
        %244 = sbr.rel (%p242) target = $region40
      $region39: #{bottleneck_forward.1} parent=5 // pred_region
        // Predicated region
        $region41: #{bottleneck_forward.1} parent=39 // pred_check
          %p245 = pneg %p48
        $region42: #{bottleneck_forward.1} parent=39 // pred_check_branch
          %247 = sbr.rel (%p245) target = $region44
        $region43: #{bottleneck_forward.1} parent=39 // pred_region
          %p248 = scmp.lt.s32.totalorder %s23, 1
          %s249 = scalar_select %p248, %s23, 1
          %s250 = smul.addr %s249, 36
          %s251 = smul.addr %s250, 8
          %s252 = scalar_lea.vmem %s0, %s251
        $region44: #{bottleneck_forward.1} parent=39 // pred_fallthru
          _
      $region40: #{bottleneck_forward.1} parent=5 // pred_fallthru
        _
      %p253 = scmp.le.s32.totalorder 1, %s16
      %p254 = scmp.lt.s32.totalorder %s16, 5
      %p255 = pnand %p253, %p254
      %p256 = pneg %p255
      // Predicated region
      $region45: #{bottleneck_forward.1} parent=5 // pred_check
        _
      $region46: #{bottleneck_forward.1} parent=5 // pred_check_branch
        %258 = sbr.rel (%p255) target = $region48
      $region47: #{bottleneck_forward.1} parent=5 // pred_region
        %s259 = ssub.s32 %s16, 1
        %p260 = scmp.lt.s32.totalorder %s25, 1
        %s261 = scalar_select %p260, %s25, 1
        %s262 = smul.addr %s261, 36
        %s263 = smul.addr %s262, 8
        %s264 = scalar_lea.vmem %s0, %s263
        %p265 = pneg %p54
        %p266 = pneg %p51
        %p267 = pneg %p75
        %p268 = pneg %p72
        %p269 = pneg %p96
        %p270 = pneg %p93
        %p271 = pneg %p117
        %p272 = pneg %p114
        %p273 = pneg %p138
        %p274 = pneg %p135
        %p275 = pneg %p159
        %p276 = pneg %p156
        %p277 = pneg %p180
        %p278 = pneg %p177
        %p279 = pneg %p208
        %p280 = pneg %p205
        %s281 = sand.u32 %s195, 1
        %s282 = scalar_lea.sflag [#allocation5], %s281
        %s283 = sand.u32 %s195, 1
        %s284 = smul.addr %s283, 128
        %s285 = scalar_lea.vmem [#allocation4], %s284
        %p286 = scmp.lt.s32.totalorder %s25, 1
        %s287 = scalar_select %p286, %s25, 1
        %s288 = smul.addr %s287, 36
        %s289 = smul.addr %s288, 8
        %s290 = scalar_lea.vmem %s0, %s289
        %s291 = smul.u32 8, %s26
        %s292 = smul.u32 %s26, 8
        %s293 = smul.u32 %s292, 16
        %s294 = scalar_lea.vmem %s290, %s293
        %v295 = vld [vmem:[%s294] sm:$0xff]
        %v296 = vld [vmem:[%s294 + $0x8] sm:$0xff]
        %v297 = vld [vmem:[%s294 + $0x10] sm:$0xff]
        %v298 = vld [vmem:[%s294 + $0x18] sm:$0xff]
        %v299 = vld [vmem:[%s294 + $0x20] sm:$0xff]
        %v300 = vld [vmem:[%s294 + $0x28] sm:$0xff]
        %v301 = vld [vmem:[%s294 + $0x30] sm:$0xff]
        %v302 = vld [vmem:[%s294 + $0x38] sm:$0xff]
        %v303 = vld [vmem:[%s294 + $0x40] sm:$0xff]
        %v304 = vld [vmem:[%s294 + $0x48] sm:$0xff]
        %v305 = vld [vmem:[%s294 + $0x50] sm:$0xff]
        %v306 = vld [vmem:[%s294 + $0x58] sm:$0xff]
        %v307 = vld [vmem:[%s294 + $0x60] sm:$0xff]
        %v308 = vld [vmem:[%s294 + $0x68] sm:$0xff]
        %v309 = vld [vmem:[%s294 + $0x70] sm:$0xff]
        %v310 = vld [vmem:[%s294 + $0x78] sm:$0xff]
        %v311 = vld [vmem:[%s294 + $0x80] sm:$0xff]
        %v312 = vld [vmem:[%s294 + $0x88] sm:$0xff]
        %v313 = vld [vmem:[%s294 + $0x90] sm:$0xff]
        %v314 = vld [vmem:[%s294 + $0x98] sm:$0xff]
        %v315 = vld [vmem:[%s1] sm:$0xff]
        %v316 = vld [vmem:[%s1 + $0x8] sm:$0xff]
        %v317 = vld [vmem:[%s1 + $0x10] sm:$0xff]
        %v318 = vld [vmem:[%s1 + $0x18] sm:$0xff]
        %v319 = vld [vmem:[%s1 + $0x20] sm:$0xff]
        %v320 = vld [vmem:[%s1 + $0x28] sm:$0xff]
        %v321 = vld [vmem:[%s1 + $0x30] sm:$0xff]
        %v322 = vld [vmem:[%s1 + $0x38] sm:$0xff]
        %v323 = vld [vmem:[%s1 + $0x40] sm:$0xff]
        %v324 = vld [vmem:[%s1 + $0x48] sm:$0xff]
        %v325 = vld [vmem:[%s1 + $0x50] sm:$0xff]
        %v326 = vld [vmem:[%s1 + $0x58] sm:$0xff]
        %v327 = vld [vmem:[%s1 + $0x60] sm:$0xff]
        %v328 = vld [vmem:[%s1 + $0x68] sm:$0xff]
        %v329 = vld [vmem:[%s1 + $0x70] sm:$0xff]
        %v330 = vld [vmem:[%s1 + $0x78] sm:$0xff]
        %v331 = vld [vmem:[%s2] sm:$0x1]
        %v333 = vlaneseq
        %v334 = vshrl.u32 %v333, 7
        %v335 = vsub.s32 0, %v334
        %v336 = vrot.slane %v331, %v335
        %338 = vmatprep.subr.mxu0 0.0
        %339 = vmatpush1.msra.mxu0 %v315
        %340 = vmatprep.subr.mxu0 0.0
        %341 = vmatpush1.msra.mxu0 %v316
        %342 = vmatprep.subr.mxu0 0.0
        %343 = vmatpush1.msra.mxu0 %v317
        %344 = vmatprep.subr.mxu0 0.0
        %345 = vmatpush1.msra.mxu0 %v318
        %346 = vmatprep.subr.mxu0 0.0
        %347 = vmatpush1.msra.mxu0 %v319
        %348 = vmatprep.subr.mxu0 0.0
        %349 = vmatpush1.msra.mxu0 %v320
        %350 = vmatprep.subr.mxu0 0.0
        %351 = vmatpush1.msra.mxu0 %v321
        %352 = vmatprep.subr.mxu0 0.0
        %353 = vmatpush1.msra.mxu0 %v322
        %354 = vmatprep.subr.mxu0 0.0
        %355 = vmatpush1.msra.mxu0 %v323
        %356 = vmatprep.subr.mxu0 0.0
        %357 = vmatpush1.msra.mxu0 %v324
        %358 = vmatprep.subr.mxu0 0.0
        %359 = vmatpush1.msra.mxu0 %v325
        %360 = vmatprep.subr.mxu0 0.0
        %361 = vmatpush1.msra.mxu0 %v326
        %362 = vmatprep.subr.mxu0 0.0
        %363 = vmatpush1.msra.mxu0 %v327
        %364 = vmatprep.subr.mxu0 0.0
        %365 = vmatpush1.msra.mxu0 %v328
        %366 = vmatprep.subr.mxu0 0.0
        %367 = vmatpush1.msra.mxu0 %v329
        %368 = vmatprep.subr.mxu0 0.0
        %369 = vmatpush1.msra.mxu0 %v330
        %370 = vmatprep.subr.mxu0 0.0
        %371 = vmatpush1.msra.mxu0 0.0
        %372 = vmatprep.subr.mxu0 0.0
        %373 = vmatpush1.msra.mxu0 0.0
        %374 = vmatprep.subr.mxu0 0.0
        %375 = vmatpush1.msra.mxu0 0.0
        %376 = vmatprep.subr.mxu0 0.0
        %377 = vmatpush1.msra.mxu0 0.0
        %378 = vmatprep.subr.mxu0 0.0
        %379 = vmatpush1.msra.mxu0 0.0
        %380 = vmatprep.subr.mxu0 0.0
        %381 = vmatpush1.msra.mxu0 0.0
        %382 = vmatprep.subr.mxu0 0.0
        %383 = vmatpush1.msra.mxu0 0.0
        %384 = vmatprep.subr.mxu0 0.0
        %385 = vmatpush1.msra.mxu0 0.0
        %386 = vmatprep.subr.mxu0 0.0
        %387 = vmatpush1.msra.mxu0 0.0
        %388 = vmatprep.subr.mxu0 0.0
        %389 = vmatpush1.msra.mxu0 0.0
        %390 = vmatprep.subr.mxu0 0.0
        %391 = vmatpush1.msra.mxu0 0.0
        %392 = vmatprep.subr.mxu0 0.0
        %393 = vmatpush1.msra.mxu0 0.0
        %394 = vmatprep.subr.mxu0 0.0
        %395 = vmatpush1.msra.mxu0 0.0
        %396 = vmatprep.subr.mxu0 0.0
        %397 = vmatpush1.msra.mxu0 0.0
        %398 = vmatprep.subr.mxu0 0.0
        %399 = vmatpush1.msra.mxu0 0.0
        %400 = vmatprep.subr.mxu0 0.0
        %401 = vmatpush1.msra.mxu0 0.0
        %402 = vmatprep.mubr.f32.mxu0 0.0
        %403 = vmatmul.mubr.f32.gmra.mrb[0].mxu0 %v295
        %v404 = vpop.f32.mrb[0].mxu0
        %v405 = vadd.f32 %v336, %v404
        %v406 = vpop.f32.mrb[0].mxu0
        %407 = vmatprep.mubr.f32.mxu0 0.0
        %408 = vmatmul.mubr.f32.gmra.mrb[0].mxu0 %v296
        %v409 = vpop.f32.mrb[0].mxu0
        %v410 = vadd.f32 %v336, %v409
        %v411 = vpop.f32.mrb[0].mxu0
        %412 = vmatprep.mubr.f32.mxu0 0.0
        %413 = vmatmul.mubr.f32.gmra.mrb[0].mxu0 %v297
        %v414 = vpop.f32.mrb[0].mxu0
        %v415 = vadd.f32 %v336, %v414
        %v416 = vpop.f32.mrb[0].mxu0
        %417 = vmatprep.mubr.f32.mxu0 0.0
        %418 = vmatmul.mubr.f32.gmra.mrb[0].mxu0 %v298
        %v419 = vpop.f32.mrb[0].mxu0
        %v420 = vadd.f32 %v336, %v419
        %v421 = vpop.f32.mrb[0].mxu0
        %422 = vmatprep.mubr.f32.mxu0 0.0
        %423 = vmatmul.mubr.f32.gmra.mrb[0].mxu0 %v299
        %v424 = vpop.f32.mrb[0].mxu0
        %v425 = vadd.f32 %v336, %v424
        %v426 = vpop.f32.mrb[0].mxu0
        %427 = vmatprep.mubr.f32.mxu0 0.0
        %428 = vmatmul.mubr.f32.gmra.mrb[0].mxu0 %v300
        %v429 = vpop.f32.mrb[0].mxu0
        %v430 = vadd.f32 %v336, %v429
        %v431 = vpop.f32.mrb[0].mxu0
        %432 = vmatprep.mubr.f32.mxu0 0.0
        %433 = vmatmul.mubr.f32.gmra.mrb[0].mxu0 %v301
        %v434 = vpop.f32.mrb[0].mxu0
        %v435 = vadd.f32 %v336, %v434
        %v436 = vpop.f32.mrb[0].mxu0
        %437 = vmatprep.mubr.f32.mxu0 0.0
        %438 = vmatmul.mubr.f32.gmra.mrb[0].mxu0 %v302
        %v439 = vpop.f32.mrb[0].mxu0
        %v440 = vadd.f32 %v336, %v439
        %v441 = vpop.f32.mrb[0].mxu0
        %442 = vmatprep.mubr.f32.mxu0 0.0
        %443 = vmatmul.mubr.f32.gmra.mrb[0].mxu0 %v303
        %v444 = vpop.f32.mrb[0].mxu0
        %v445 = vadd.f32 %v336, %v444
        %v446 = vpop.f32.mrb[0].mxu0
        %447 = vmatprep.mubr.f32.mxu0 0.0
        %448 = vmatmul.mubr.f32.gmra.mrb[0].mxu0 %v304
        %v449 = vpop.f32.mrb[0].mxu0
        %v450 = vadd.f32 %v336, %v449
        %v451 = vpop.f32.mrb[0].mxu0
        %452 = vmatprep.mubr.f32.mxu0 0.0
        %453 = vmatmul.mubr.f32.gmra.mrb[0].mxu0 %v305
        %v454 = vpop.f32.mrb[0].mxu0
        %v455 = vadd.f32 %v336, %v454
        %v456 = vpop.f32.mrb[0].mxu0
        %457 = vmatprep.mubr.f32.mxu0 0.0
        %458 = vmatmul.mubr.f32.gmra.mrb[0].mxu0 %v306
        %v459 = vpop.f32.mrb[0].mxu0
        %v460 = vadd.f32 %v336, %v459
        %v461 = vpop.f32.mrb[0].mxu0
        %462 = vmatprep.mubr.f32.mxu0 0.0
        %463 = vmatmul.mubr.f32.gmra.mrb[0].mxu0 %v307
        %v464 = vpop.f32.mrb[0].mxu0
        %v465 = vadd.f32 %v336, %v464
        %v466 = vpop.f32.mrb[0].mxu0
        %467 = vmatprep.mubr.f32.mxu0 0.0
        %468 = vmatmul.mubr.f32.gmra.mrb[0].mxu0 %v308
        %v469 = vpop.f32.mrb[0].mxu0
        %v470 = vadd.f32 %v336, %v469
        %v471 = vpop.f32.mrb[0].mxu0
        %472 = vmatprep.mubr.f32.mxu0 0.0
        %473 = vmatmul.mubr.f32.gmra.mrb[0].mxu0 %v309
        %v474 = vpop.f32.mrb[0].mxu0
        %v475 = vadd.f32 %v336, %v474
        %v476 = vpop.f32.mrb[0].mxu0
        %477 = vmatprep.mubr.f32.mxu0 0.0
        %478 = vmatmul.mubr.f32.gmra.mrb[0].mxu0 %v310
        %v479 = vpop.f32.mrb[0].mxu0
        %v480 = vadd.f32 %v336, %v479
        %v481 = vpop.f32.mrb[0].mxu0
        %482 = vmatprep.mubr.f32.mxu0 0.0
        %483 = vmatmul.mubr.f32.gmra.mrb[0].mxu0 %v311
        %v484 = vpop.f32.mrb[0].mxu0
        %v485 = vadd.f32 %v336, %v484
        %v486 = vpop.f32.mrb[0].mxu0
        %487 = vmatprep.mubr.f32.mxu0 0.0
        %488 = vmatmul.mubr.f32.gmra.mrb[0].mxu0 %v312
        %v489 = vpop.f32.mrb[0].mxu0
        %v490 = vadd.f32 %v336, %v489
        %v491 = vpop.f32.mrb[0].mxu0
        %492 = vmatprep.mubr.f32.mxu0 0.0
        %493 = vmatmul.mubr.f32.gmra.mrb[0].mxu0 %v313
        %v494 = vpop.f32.mrb[0].mxu0
        %v495 = vadd.f32 %v336, %v494
        %v496 = vpop.f32.mrb[0].mxu0
        %497 = vmatprep.mubr.f32.mxu0 0.0
        %498 = vmatmul.mubr.f32.gmra.mrb[0].mxu0 %v314
        %v499 = vpop.f32.mrb[0].mxu0
        %v500 = vadd.f32 %v336, %v499
        %v501 = vpop.f32.mrb[0].mxu0
        %502 = vdwg.mxu0
        %v503 = vmax.f32 %v405, 0.0
        %v504 = vmax.f32 %v410, 0.0
        %v505 = vmax.f32 %v415, 0.0
        %v506 = vmax.f32 %v420, 0.0
        %v507 = vmax.f32 %v425, 0.0
        %v508 = vmax.f32 %v430, 0.0
        %v509 = vmax.f32 %v435, 0.0
        %v510 = vmax.f32 %v440, 0.0
        %v511 = vmax.f32 %v445, 0.0
        %v512 = vmax.f32 %v450, 0.0
        %v513 = vmax.f32 %v455, 0.0
        %v514 = vmax.f32 %v460, 0.0
        %v515 = vmax.f32 %v465, 0.0
        %v516 = vmax.f32 %v470, 0.0
        %v517 = vmax.f32 %v475, 0.0
        %v518 = vmax.f32 %v480, 0.0
        %v519 = vmax.f32 %v485, 0.0
        %v520 = vmax.f32 %v490, 0.0
        %v521 = vmax.f32 %v495, 0.0
        %v522 = vmax.f32 %v500, 0.0
        %v523 = vlaneseq
        %v524 = vshrl.u32 %v523, 7
        %v525 = vadd.s32 %v524, 8
        %v526 = vadd.s32 %v524, 16
        %v527 = vadd.s32 %v524, 24
        %v528 = vadd.s32 %v524, 32
        %v529 = vadd.s32 %v524, 40
        %v530 = vadd.s32 %v524, 48
        %v531 = vadd.s32 %v524, 56
        %v532 = vadd.s32 %v524, 64
        %v533 = vadd.s32 %v524, 72
        %v534 = vadd.s32 %v524, 80
        %v535 = vadd.s32 %v524, 88
        %v536 = vadd.s32 %v524, 96
        %v537 = vadd.s32 %v524, 104
        %v538 = vadd.s32 %v524, 112
        %v539 = vadd.s32 %v524, 120
        %v540 = vadd.s32 %v524, 128
        %v541 = vadd.s32 %v524, 136
        %v542 = vadd.s32 %v524, 144
        %v543 = vadd.s32 %v524, 152
        %s544 = ssub.s32 1, %s292
        %s545 = smul.u32 %s544, 16
        %v546 = vstv %s545
        %vm547 = vcmp.ge.s32.totalorder %v524, %v546
        %vm548 = vcmp.ge.s32.totalorder %v525, %v546
        %vm549 = vcmp.ge.s32.totalorder %v526, %v546
        %vm550 = vcmp.ge.s32.totalorder %v527, %v546
        %vm551 = vcmp.ge.s32.totalorder %v528, %v546
        %vm552 = vcmp.ge.s32.totalorder %v529, %v546
        %vm553 = vcmp.ge.s32.totalorder %v530, %v546
        %vm554 = vcmp.ge.s32.totalorder %v531, %v546
        %vm555 = vcmp.ge.s32.totalorder %v532, %v546
        %vm556 = vcmp.ge.s32.totalorder %v533, %v546
        %vm557 = vcmp.ge.s32.totalorder %v534, %v546
        %vm558 = vcmp.ge.s32.totalorder %v535, %v546
        %vm559 = vcmp.ge.s32.totalorder %v536, %v546
        %vm560 = vcmp.ge.s32.totalorder %v537, %v546
        %vm561 = vcmp.ge.s32.totalorder %v538, %v546
        %vm562 = vcmp.ge.s32.totalorder %v539, %v546
        %vm563 = vcmp.ge.s32.totalorder %v540, %v546
        %vm564 = vcmp.ge.s32.totalorder %v541, %v546
        %vm565 = vcmp.ge.s32.totalorder %v542, %v546
        %vm566 = vcmp.ge.s32.totalorder %v543, %v546
        %s567 = ssub.s32 17, %s292
        %s568 = smul.u32 %s567, 16
        %v569 = vstv %s568
        %vm570 = vcmp.lt.s32.totalorder %v524, %v569
        %vm571 = vcmp.lt.s32.totalorder %v525, %v569
        %vm572 = vcmp.lt.s32.totalorder %v526, %v569
        %vm573 = vcmp.lt.s32.totalorder %v527, %v569
        %vm574 = vcmp.lt.s32.totalorder %v528, %v569
        %vm575 = vcmp.lt.s32.totalorder %v529, %v569
        %vm576 = vcmp.lt.s32.totalorder %v530, %v569
        %vm577 = vcmp.lt.s32.totalorder %v531, %v569
        %vm578 = vcmp.lt.s32.totalorder %v532, %v569
        %vm579 = vcmp.lt.s32.totalorder %v533, %v569
        %vm580 = vcmp.lt.s32.totalorder %v534, %v569
        %vm581 = vcmp.lt.s32.totalorder %v535, %v569
        %vm582 = vcmp.lt.s32.totalorder %v536, %v569
        %vm583 = vcmp.lt.s32.totalorder %v537, %v569
        %vm584 = vcmp.lt.s32.totalorder %v538, %v569
        %vm585 = vcmp.lt.s32.totalorder %v539, %v569
        %vm586 = vcmp.lt.s32.totalorder %v540, %v569
        %vm587 = vcmp.lt.s32.totalorder %v541, %v569
        %vm588 = vcmp.lt.s32.totalorder %v542, %v569
        %vm589 = vcmp.lt.s32.totalorder %v543, %v569
        %vm590 = vmand %vm547, %vm570
        %vm591 = vmand %vm548, %vm571
        %vm592 = vmand %vm549, %vm572
        %vm593 = vmand %vm550, %vm573
        %vm594 = vmand %vm551, %vm574
        %vm595 = vmand %vm552, %vm575
        %vm596 = vmand %vm553, %vm576
        %vm597 = vmand %vm554, %vm577
        %vm598 = vmand %vm555, %vm578
        %vm599 = vmand %vm556, %vm579
        %vm600 = vmand %vm557, %vm580
        %vm601 = vmand %vm558, %vm581
        %vm602 = vmand %vm559, %vm582
        %vm603 = vmand %vm560, %vm583
        %vm604 = vmand %vm561, %vm584
        %vm605 = vmand %vm562, %vm585
        %vm606 = vmand %vm563, %vm586
        %vm607 = vmand %vm564, %vm587
        %vm608 = vmand %vm565, %vm588
        %vm609 = vmand %vm566, %vm589
        %v610 = vsel %vm590, 1, 0
        %v611 = vsel %vm591, 1, 0
        %v612 = vsel %vm592, 1, 0
        %v613 = vsel %vm593, 1, 0
        %v614 = vsel %vm594, 1, 0
        %v615 = vsel %vm595, 1, 0
        %v616 = vsel %vm596, 1, 0
        %v617 = vsel %vm597, 1, 0
        %v618 = vsel %vm598, 1, 0
        %v619 = vsel %vm599, 1, 0
        %v620 = vsel %vm600, 1, 0
        %v621 = vsel %vm601, 1, 0
        %v622 = vsel %vm602, 1, 0
        %v623 = vsel %vm603, 1, 0
        %v624 = vsel %vm604, 1, 0
        %v625 = vsel %vm605, 1, 0
        %v626 = vsel %vm606, 1, 0
        %v627 = vsel %vm607, 1, 0
        %v628 = vsel %vm608, 1, 0
        %v629 = vsel %vm609, 1, 0
        %vm630 = vcmp.eq.s32.totalorder %v610, 1
        %vm631 = vcmp.eq.s32.totalorder %v611, 1
        %vm632 = vcmp.eq.s32.totalorder %v612, 1
        %vm633 = vcmp.eq.s32.totalorder %v613, 1
        %vm634 = vcmp.eq.s32.totalorder %v614, 1
        %vm635 = vcmp.eq.s32.totalorder %v615, 1
        %vm636 = vcmp.eq.s32.totalorder %v616, 1
        %vm637 = vcmp.eq.s32.totalorder %v617, 1
        %vm638 = vcmp.eq.s32.totalorder %v618, 1
        %vm639 = vcmp.eq.s32.totalorder %v619, 1
        %vm640 = vcmp.eq.s32.totalorder %v620, 1
        %vm641 = vcmp.eq.s32.totalorder %v621, 1
        %vm642 = vcmp.eq.s32.totalorder %v622, 1
        %vm643 = vcmp.eq.s32.totalorder %v623, 1
        %vm644 = vcmp.eq.s32.totalorder %v624, 1
        %vm645 = vcmp.eq.s32.totalorder %v625, 1
        %vm646 = vcmp.eq.s32.totalorder %v626, 1
        %vm647 = vcmp.eq.s32.totalorder %v627, 1
        %vm648 = vcmp.eq.s32.totalorder %v628, 1
        %vm649 = vcmp.eq.s32.totalorder %v629, 1
        %v650 = vsel %vm630, %v503, 0.0
        %v651 = vsel %vm631, %v504, 0.0
        %v652 = vsel %vm632, %v505, 0.0
        %v653 = vsel %vm633, %v506, 0.0
        %v654 = vsel %vm634, %v507, 0.0
        %v655 = vsel %vm635, %v508, 0.0
        %v656 = vsel %vm636, %v509, 0.0
        %v657 = vsel %vm637, %v510, 0.0
        %v658 = vsel %vm638, %v511, 0.0
        %v659 = vsel %vm639, %v512, 0.0
        %v660 = vsel %vm640, %v513, 0.0
        %v661 = vsel %vm641, %v514, 0.0
        %v662 = vsel %vm642, %v515, 0.0
        %v663 = vsel %vm643, %v516, 0.0
        %v664 = vsel %vm644, %v517, 0.0
        %v665 = vsel %vm645, %v518, 0.0
        %v666 = vsel %vm646, %v519, 0.0
        %v667 = vsel %vm647, %v520, 0.0
        %v668 = vsel %vm648, %v521, 0.0
        %v669 = vsel %vm649, %v522, 0.0
        %vm670 = vcmask 253952
        %671 = vst.msk [vmem:[#allocation2] sm:$0x1] %vm670, 0.0
        %672 = vst.msk [vmem:[#allocation2 + $0x18] sm:$0x1] %vm670, 0.0
        %673 = vst.msk [vmem:[#allocation2 + $0x30] sm:$0x1] %vm670, 0.0
        %674 = vst.msk [vmem:[#allocation2 + $0x48] sm:$0x1] %vm670, 0.0
        %675 = vst.msk [vmem:[#allocation2 + $0x60] sm:$0x1] %vm670, 0.0
        %676 = vst.msk [vmem:[#allocation2 + $0x78] sm:$0x1] %vm670, 0.0
        %677 = vst.msk [vmem:[#allocation2 + $0x90] sm:$0x1] %vm670, 0.0
        %678 = vst.msk [vmem:[#allocation2 + $0xa8] sm:$0x1] %vm670, 0.0
        %679 = vst.msk [vmem:[#allocation2 + $0xc0] sm:$0x1] %vm670, 0.0
        %680 = vst.msk [vmem:[#allocation2 + $0xd8] sm:$0x1] %vm670, 0.0
        %681 = vst.msk [vmem:[#allocation2 + $0x11] sm:$0x1] %vm670, 0.0
        %682 = vst.msk [vmem:[#allocation2 + $0x29] sm:$0x1] %vm670, 0.0
        %683 = vst.msk [vmem:[#allocation2 + $0x41] sm:$0x1] %vm670, 0.0
        %684 = vst.msk [vmem:[#allocation2 + $0x59] sm:$0x1] %vm670, 0.0
        %685 = vst.msk [vmem:[#allocation2 + $0x71] sm:$0x1] %vm670, 0.0
        %686 = vst.msk [vmem:[#allocation2 + $0x89] sm:$0x1] %vm670, 0.0
        %687 = vst.msk [vmem:[#allocation2 + $0xa1] sm:$0x1] %vm670, 0.0
        %688 = vst.msk [vmem:[#allocation2 + $0xb9] sm:$0x1] %vm670, 0.0
        %689 = vst.msk [vmem:[#allocation2 + $0xd1] sm:$0x1] %vm670, 0.0
        %690 = vst.msk [vmem:[#allocation2 + $0xe9] sm:$0x1] %vm670, 0.0
        %vm691 = vcmask 261120
        %692 = vst.msk [vmem:[#allocation2 + $0x1] sm:$0xff] %vm691, %v650
        %693 = vst.msk [vmem:[#allocation2 + $0x9] sm:$0xff] %vm691, %v651
        %694 = vst.msk [vmem:[#allocation2 + $0x19] sm:$0xff] %vm691, %v652
        %695 = vst.msk [vmem:[#allocation2 + $0x21] sm:$0xff] %vm691, %v653
        %696 = vst.msk [vmem:[#allocation2 + $0x31] sm:$0xff] %vm691, %v654
        %697 = vst.msk [vmem:[#allocation2 + $0x39] sm:$0xff] %vm691, %v655
        %698 = vst.msk [vmem:[#allocation2 + $0x49] sm:$0xff] %vm691, %v656
        %699 = vst.msk [vmem:[#allocation2 + $0x51] sm:$0xff] %vm691, %v657
        %700 = vst.msk [vmem:[#allocation2 + $0x61] sm:$0xff] %vm691, %v658
        %701 = vst.msk [vmem:[#allocation2 + $0x69] sm:$0xff] %vm691, %v659
        %702 = vst.msk [vmem:[#allocation2 + $0x79] sm:$0xff] %vm691, %v660
        %703 = vst.msk [vmem:[#allocation2 + $0x81] sm:$0xff] %vm691, %v661
        %704 = vst.msk [vmem:[#allocation2 + $0x91] sm:$0xff] %vm691, %v662
        %705 = vst.msk [vmem:[#allocation2 + $0x99] sm:$0xff] %vm691, %v663
        %706 = vst.msk [vmem:[#allocation2 + $0xa9] sm:$0xff] %vm691, %v664
        %707 = vst.msk [vmem:[#allocation2 + $0xb1] sm:$0xff] %vm691, %v665
        %708 = vst.msk [vmem:[#allocation2 + $0xc1] sm:$0xff] %vm691, %v666
        %709 = vst.msk [vmem:[#allocation2 + $0xc9] sm:$0xff] %vm691, %v667
        %710 = vst.msk [vmem:[#allocation2 + $0xd9] sm:$0xff] %vm691, %v668
        %711 = vst.msk [vmem:[#allocation2 + $0xe1] sm:$0xff] %vm691, %v669
        %v712 = vld [vmem:[#allocation2] sm:$0xff]
        %v713 = vld [vmem:[#allocation2 + $0x8] sm:$0xff]
        %v714 = vld [vmem:[#allocation2 + $0x18] sm:$0xff]
        %v715 = vld [vmem:[#allocation2 + $0x20] sm:$0xff]
        %v716 = vld [vmem:[#allocation2 + $0x30] sm:$0xff]
        %v717 = vld [vmem:[#allocation2 + $0x38] sm:$0xff]
        %v718 = vld [vmem:[#allocation2 + $0x48] sm:$0xff]
        %v719 = vld [vmem:[#allocation2 + $0x50] sm:$0xff]
        %v720 = vld [vmem:[#allocation2 + $0x60] sm:$0xff]
        %v721 = vld [vmem:[#allocation2 + $0x68] sm:$0xff]
        %v722 = vld [vmem:[#allocation2 + $0x78] sm:$0xff]
        %v723 = vld [vmem:[#allocation2 + $0x80] sm:$0xff]
        %v724 = vld [vmem:[#allocation2 + $0x90] sm:$0xff]
        %v725 = vld [vmem:[#allocation2 + $0x98] sm:$0xff]
        %v726 = vld [vmem:[#allocation2 + $0xa8] sm:$0xff]
        %v727 = vld [vmem:[#allocation2 + $0xb0] sm:$0xff]
        %728 = vst.msk [vmem:[#allocation3] sm:$0xff] %vm691, %v712
        %729 = vst.msk [vmem:[#allocation3 + $0x18] sm:$0xff] %vm691, %v713
        %730 = vst.msk [vmem:[#allocation3 + $0x30] sm:$0xff] %vm691, %v714
        %731 = vst.msk [vmem:[#allocation3 + $0x48] sm:$0xff] %vm691, %v715
        %732 = vst.msk [vmem:[#allocation3 + $0x60] sm:$0xff] %vm691, %v716
        %733 = vst.msk [vmem:[#allocation3 + $0x78] sm:$0xff] %vm691, %v717
        %734 = vst.msk [vmem:[#allocation3 + $0x90] sm:$0xff] %vm691, %v718
        %735 = vst.msk [vmem:[#allocation3 + $0xa8] sm:$0xff] %vm691, %v719
        %736 = vst.msk [vmem:[#allocation3 + $0xc0] sm:$0xff] %vm691, %v720
        %737 = vst.msk [vmem:[#allocation3 + $0xd8] sm:$0xff] %vm691, %v721
        %738 = vst.msk [vmem:[#allocation3 + $0xf0] sm:$0xff] %vm691, %v722
        %739 = vst.msk [vmem:[#allocation3 + $0x108] sm:$0xff] %vm691, %v723
        %740 = vst.msk [vmem:[#allocation3 + $0x120] sm:$0xff] %vm691, %v724
        %741 = vst.msk [vmem:[#allocation3 + $0x138] sm:$0xff] %vm691, %v725
        %742 = vst.msk [vmem:[#allocation3 + $0x150] sm:$0xff] %vm691, %v726
        %743 = vst.msk [vmem:[#allocation3 + $0x168] sm:$0xff] %vm691, %v727
        %v744 = vld [vmem:[#allocation2 + $0x1] sm:$0xff]
        %v745 = vld [vmem:[#allocation2 + $0x9] sm:$0xff]
        %v746 = vld [vmem:[#allocation2 + $0x19] sm:$0xff]
        %v747 = vld [vmem:[#allocation2 + $0x21] sm:$0xff]
        %v748 = vld [vmem:[#allocation2 + $0x31] sm:$0xff]
        %v749 = vld [vmem:[#allocation2 + $0x39] sm:$0xff]
        %v750 = vld [vmem:[#allocation2 + $0x49] sm:$0xff]
        %v751 = vld [vmem:[#allocation2 + $0x51] sm:$0xff]
        %v752 = vld [vmem:[#allocation2 + $0x61] sm:$0xff]
        %v753 = vld [vmem:[#allocation2 + $0x69] sm:$0xff]
        %v754 = vld [vmem:[#allocation2 + $0x79] sm:$0xff]
        %v755 = vld [vmem:[#allocation2 + $0x81] sm:$0xff]
        %v756 = vld [vmem:[#allocation2 + $0x91] sm:$0xff]
        %v757 = vld [vmem:[#allocation2 + $0x99] sm:$0xff]
        %v758 = vld [vmem:[#allocation2 + $0xa9] sm:$0xff]
        %v759 = vld [vmem:[#allocation2 + $0xb1] sm:$0xff]
        %776 = vrot.lane.b32.xlu0 %v744, 32
        %v777 = vpop.permute.xlu0 %776
        %778 = vrot.lane.b32.xlu0 %v745, 32
        %v779 = vpop.permute.xlu0 %778
        %780 = vrot.lane.b32.xlu0 %v746, 32
        %v781 = vpop.permute.xlu0 %780
        %782 = vrot.lane.b32.xlu0 %v747, 32
        %v783 = vpop.permute.xlu0 %782
        %784 = vrot.lane.b32.xlu0 %v748, 32
        %v785 = vpop.permute.xlu0 %784
        %786 = vrot.lane.b32.xlu0 %v749, 32
        %v787 = vpop.permute.xlu0 %786
        %788 = vrot.lane.b32.xlu0 %v750, 32
        %v789 = vpop.permute.xlu0 %788
        %790 = vrot.lane.b32.xlu0 %v751, 32
        %v791 = vpop.permute.xlu0 %790
        %792 = vrot.lane.b32.xlu0 %v752, 32
        %v793 = vpop.permute.xlu0 %792
        %794 = vrot.lane.b32.xlu0 %v753, 32
        %v795 = vpop.permute.xlu0 %794
        %796 = vrot.lane.b32.xlu0 %v754, 32
        %v797 = vpop.permute.xlu0 %796
        %798 = vrot.lane.b32.xlu0 %v755, 32
        %v799 = vpop.permute.xlu0 %798
        %800 = vrot.lane.b32.xlu0 %v756, 32
        %v801 = vpop.permute.xlu0 %800
        %802 = vrot.lane.b32.xlu0 %v757, 32
        %v803 = vpop.permute.xlu0 %802
        %804 = vrot.lane.b32.xlu0 %v758, 32
        %v805 = vpop.permute.xlu0 %804
        %806 = vrot.lane.b32.xlu0 %v759, 32
        %v807 = vpop.permute.xlu0 %806
        %vm824 = vcmask 523520
        %825 = vst.msk [vmem:[#allocation3] sm:$0xff] %vm824, %v777
        %826 = vst.msk [vmem:[#allocation3 + $0x18] sm:$0xff] %vm824, %v779
        %827 = vst.msk [vmem:[#allocation3 + $0x30] sm:$0xff] %vm824, %v781
        %828 = vst.msk [vmem:[#allocation3 + $0x48] sm:$0xff] %vm824, %v783
        %829 = vst.msk [vmem:[#allocation3 + $0x60] sm:$0xff] %vm824, %v785
        %830 = vst.msk [vmem:[#allocation3 + $0x78] sm:$0xff] %vm824, %v787
        %831 = vst.msk [vmem:[#allocation3 + $0x90] sm:$0xff] %vm824, %v789
        %832 = vst.msk [vmem:[#allocation3 + $0xa8] sm:$0xff] %vm824, %v791
        %833 = vst.msk [vmem:[#allocation3 + $0xc0] sm:$0xff] %vm824, %v793
        %834 = vst.msk [vmem:[#allocation3 + $0xd8] sm:$0xff] %vm824, %v795
        %835 = vst.msk [vmem:[#allocation3 + $0xf0] sm:$0xff] %vm824, %v797
        %836 = vst.msk [vmem:[#allocation3 + $0x108] sm:$0xff] %vm824, %v799
        %837 = vst.msk [vmem:[#allocation3 + $0x120] sm:$0xff] %vm824, %v801
        %838 = vst.msk [vmem:[#allocation3 + $0x138] sm:$0xff] %vm824, %v803
        %839 = vst.msk [vmem:[#allocation3 + $0x150] sm:$0xff] %vm824, %v805
        %840 = vst.msk [vmem:[#allocation3 + $0x168] sm:$0xff] %vm824, %v807
        %v841 = vld [vmem:[#allocation2 + $0x2] sm:$0xff]
        %v842 = vld [vmem:[#allocation2 + $0xa] sm:$0xff]
        %v843 = vld [vmem:[#allocation2 + $0x1a] sm:$0xff]
        %v844 = vld [vmem:[#allocation2 + $0x22] sm:$0xff]
        %v845 = vld [vmem:[#allocation2 + $0x32] sm:$0xff]
        %v846 = vld [vmem:[#allocation2 + $0x3a] sm:$0xff]
        %v847 = vld [vmem:[#allocation2 + $0x4a] sm:$0xff]
        %v848 = vld [vmem:[#allocation2 + $0x52] sm:$0xff]
        %v849 = vld [vmem:[#allocation2 + $0x62] sm:$0xff]
        %v850 = vld [vmem:[#allocation2 + $0x6a] sm:$0xff]
        %v851 = vld [vmem:[#allocation2 + $0x7a] sm:$0xff]
        %v852 = vld [vmem:[#allocation2 + $0x82] sm:$0xff]
        %v853 = vld [vmem:[#allocation2 + $0x92] sm:$0xff]
        %v854 = vld [vmem:[#allocation2 + $0x9a] sm:$0xff]
        %v855 = vld [vmem:[#allocation2 + $0xaa] sm:$0xff]
        %v856 = vld [vmem:[#allocation2 + $0xb2] sm:$0xff]
        %873 = vrot.lane.b32.xlu0 %v841, 64
        %v874 = vpop.permute.xlu0 %873
        %875 = vrot.lane.b32.xlu0 %v842, 64
        %v876 = vpop.permute.xlu0 %875
        %877 = vrot.lane.b32.xlu0 %v843, 64
        %v878 = vpop.permute.xlu0 %877
        %879 = vrot.lane.b32.xlu0 %v844, 64
        %v880 = vpop.permute.xlu0 %879
        %881 = vrot.lane.b32.xlu0 %v845, 64
        %v882 = vpop.permute.xlu0 %881
        %883 = vrot.lane.b32.xlu0 %v846, 64
        %v884 = vpop.permute.xlu0 %883
        %885 = vrot.lane.b32.xlu0 %v847, 64
        %v886 = vpop.permute.xlu0 %885
        %887 = vrot.lane.b32.xlu0 %v848, 64
        %v888 = vpop.permute.xlu0 %887
        %889 = vrot.lane.b32.xlu0 %v849, 64
        %v890 = vpop.permute.xlu0 %889
        %891 = vrot.lane.b32.xlu0 %v850, 64
        %v892 = vpop.permute.xlu0 %891
        %893 = vrot.lane.b32.xlu0 %v851, 64
        %v894 = vpop.permute.xlu0 %893
        %895 = vrot.lane.b32.xlu0 %v852, 64
        %v896 = vpop.permute.xlu0 %895
        %897 = vrot.lane.b32.xlu0 %v853, 64
        %v898 = vpop.permute.xlu0 %897
        %899 = vrot.lane.b32.xlu0 %v854, 64
        %v900 = vpop.permute.xlu0 %899
        %901 = vrot.lane.b32.xlu0 %v855, 64
        %v902 = vpop.permute.xlu0 %901
        %903 = vrot.lane.b32.xlu0 %v856, 64
        %v904 = vpop.permute.xlu0 %903
        %vm921 = vcmask 785920
        %922 = vst.msk [vmem:[#allocation3] sm:$0xff] %vm921, %v874
        %923 = vst.msk [vmem:[#allocation3 + $0x18] sm:$0xff] %vm921, %v876
        %924 = vst.msk [vmem:[#allocation3 + $0x30] sm:$0xff] %vm921, %v878
        %925 = vst.msk [vmem:[#allocation3 + $0x48] sm:$0xff] %vm921, %v880
        %926 = vst.msk [vmem:[#allocation3 + $0x60] sm:$0xff] %vm921, %v882
        %927 = vst.msk [vmem:[#allocation3 + $0x78] sm:$0xff] %vm921, %v884
        %928 = vst.msk [vmem:[#allocation3 + $0x90] sm:$0xff] %vm921, %v886
        %929 = vst.msk [vmem:[#allocation3 + $0xa8] sm:$0xff] %vm921, %v888
        %930 = vst.msk [vmem:[#allocation3 + $0xc0] sm:$0xff] %vm921, %v890
        %931 = vst.msk [vmem:[#allocation3 + $0xd8] sm:$0xff] %vm921, %v892
        %932 = vst.msk [vmem:[#allocation3 + $0xf0] sm:$0xff] %vm921, %v894
        %933 = vst.msk [vmem:[#allocation3 + $0x108] sm:$0xff] %vm921, %v896
        %934 = vst.msk [vmem:[#allocation3 + $0x120] sm:$0xff] %vm921, %v898
        %935 = vst.msk [vmem:[#allocation3 + $0x138] sm:$0xff] %vm921, %v900
        %936 = vst.msk [vmem:[#allocation3 + $0x150] sm:$0xff] %vm921, %v902
        %937 = vst.msk [vmem:[#allocation3 + $0x168] sm:$0xff] %vm921, %v904
        %s938 = scalar_lea.vmem [#allocation2], 24
        %v939 = vld [vmem:[%s938] sm:$0xff]
        %v940 = vld [vmem:[%s938 + $0x8] sm:$0xff]
        %v941 = vld [vmem:[%s938 + $0x18] sm:$0xff]
        %v942 = vld [vmem:[%s938 + $0x20] sm:$0xff]
        %v943 = vld [vmem:[%s938 + $0x30] sm:$0xff]
        %v944 = vld [vmem:[%s938 + $0x38] sm:$0xff]
        %v945 = vld [vmem:[%s938 + $0x48] sm:$0xff]
        %v946 = vld [vmem:[%s938 + $0x50] sm:$0xff]
        %v947 = vld [vmem:[%s938 + $0x60] sm:$0xff]
        %v948 = vld [vmem:[%s938 + $0x68] sm:$0xff]
        %v949 = vld [vmem:[%s938 + $0x78] sm:$0xff]
        %v950 = vld [vmem:[%s938 + $0x80] sm:$0xff]
        %v951 = vld [vmem:[%s938 + $0x90] sm:$0xff]
        %v952 = vld [vmem:[%s938 + $0x98] sm:$0xff]
        %v953 = vld [vmem:[%s938 + $0xa8] sm:$0xff]
        %v954 = vld [vmem:[%s938 + $0xb0] sm:$0xff]
        %971 = vrot.lane.b32.xlu0 %v939, 96
        %v972 = vpop.permute.xlu0 %971
        %973 = vrot.lane.b32.xlu0 %v940, 96
        %v974 = vpop.permute.xlu0 %973
        %975 = vrot.lane.b32.xlu0 %v941, 96
        %v976 = vpop.permute.xlu0 %975
        %977 = vrot.lane.b32.xlu0 %v942, 96
        %v978 = vpop.permute.xlu0 %977
        %979 = vrot.lane.b32.xlu0 %v943, 96
        %v980 = vpop.permute.xlu0 %979
        %981 = vrot.lane.b32.xlu0 %v944, 96
        %v982 = vpop.permute.xlu0 %981
        %983 = vrot.lane.b32.xlu0 %v945, 96
        %v984 = vpop.permute.xlu0 %983
        %985 = vrot.lane.b32.xlu0 %v946, 96
        %v986 = vpop.permute.xlu0 %985
        %987 = vrot.lane.b32.xlu0 %v947, 96
        %v988 = vpop.permute.xlu0 %987
        %989 = vrot.lane.b32.xlu0 %v948, 96
        %v990 = vpop.permute.xlu0 %989
        %991 = vrot.lane.b32.xlu0 %v949, 96
        %v992 = vpop.permute.xlu0 %991
        %993 = vrot.lane.b32.xlu0 %v950, 96
        %v994 = vpop.permute.xlu0 %993
        %995 = vrot.lane.b32.xlu0 %v951, 96
        %v996 = vpop.permute.xlu0 %995
        %997 = vrot.lane.b32.xlu0 %v952, 96
        %v998 = vpop.permute.xlu0 %997
        %999 = vrot.lane.b32.xlu0 %v953, 96
        %v1000 = vpop.permute.xlu0 %999
        %1001 = vrot.lane.b32.xlu0 %v954, 96
        %v1002 = vpop.permute.xlu0 %1001
        %vm1019 = vcmask 1048320
        %1020 = vst.msk [vmem:[#allocation3] sm:$0xff] %vm1019, %v972
        %1021 = vst.msk [vmem:[#allocation3 + $0x18] sm:$0xff] %vm1019, %v974
        %1022 = vst.msk [vmem:[#allocation3 + $0x30] sm:$0xff] %vm1019, %v976
        %1023 = vst.msk [vmem:[#allocation3 + $0x48] sm:$0xff] %vm1019, %v978
        %1024 = vst.msk [vmem:[#allocation3 + $0x60] sm:$0xff] %vm1019, %v980
        %1025 = vst.msk [vmem:[#allocation3 + $0x78] sm:$0xff] %vm1019, %v982
        %1026 = vst.msk [vmem:[#allocation3 + $0x90] sm:$0xff] %vm1019, %v984
        %1027 = vst.msk [vmem:[#allocation3 + $0xa8] sm:$0xff] %vm1019, %v986
        %1028 = vst.msk [vmem:[#allocation3 + $0xc0] sm:$0xff] %vm1019, %v988
        %1029 = vst.msk [vmem:[#allocation3 + $0xd8] sm:$0xff] %vm1019, %v990
        %1030 = vst.msk [vmem:[#allocation3 + $0xf0] sm:$0xff] %vm1019, %v992
        %1031 = vst.msk [vmem:[#allocation3 + $0x108] sm:$0xff] %vm1019, %v994
        %1032 = vst.msk [vmem:[#allocation3 + $0x120] sm:$0xff] %vm1019, %v996
        %1033 = vst.msk [vmem:[#allocation3 + $0x138] sm:$0xff] %vm1019, %v998
        %1034 = vst.msk [vmem:[#allocation3 + $0x150] sm:$0xff] %vm1019, %v1000
        %1035 = vst.msk [vmem:[#allocation3 + $0x168] sm:$0xff] %vm1019, %v1002
        %v1036 = vld [vmem:[%s938 + $0x1] sm:$0xff]
        %v1037 = vld [vmem:[%s938 + $0x9] sm:$0xff]
        %v1038 = vld [vmem:[%s938 + $0x19] sm:$0xff]
        %v1039 = vld [vmem:[%s938 + $0x21] sm:$0xff]
        %v1040 = vld [vmem:[%s938 + $0x31] sm:$0xff]
        %v1041 = vld [vmem:[%s938 + $0x39] sm:$0xff]
        %v1042 = vld [vmem:[%s938 + $0x49] sm:$0xff]
        %v1043 = vld [vmem:[%s938 + $0x51] sm:$0xff]
        %v1044 = vld [vmem:[%s938 + $0x61] sm:$0xff]
        %v1045 = vld [vmem:[%s938 + $0x69] sm:$0xff]
        %v1046 = vld [vmem:[%s938 + $0x79] sm:$0xff]
        %v1047 = vld [vmem:[%s938 + $0x81] sm:$0xff]
        %v1048 = vld [vmem:[%s938 + $0x91] sm:$0xff]
        %v1049 = vld [vmem:[%s938 + $0x99] sm:$0xff]
        %v1050 = vld [vmem:[%s938 + $0xa9] sm:$0xff]
        %v1051 = vld [vmem:[%s938 + $0xb1] sm:$0xff]
        %1052 = vst.msk [vmem:[#allocation3 + $0x8] sm:$0xff] %vm691, %v1036
        %1053 = vst.msk [vmem:[#allocation3 + $0x20] sm:$0xff] %vm691, %v1037
        %1054 = vst.msk [vmem:[#allocation3 + $0x38] sm:$0xff] %vm691, %v1038
        %1055 = vst.msk [vmem:[#allocation3 + $0x50] sm:$0xff] %vm691, %v1039
        %1056 = vst.msk [vmem:[#allocation3 + $0x68] sm:$0xff] %vm691, %v1040
        %1057 = vst.msk [vmem:[#allocation3 + $0x80] sm:$0xff] %vm691, %v1041
        %1058 = vst.msk [vmem:[#allocation3 + $0x98] sm:$0xff] %vm691, %v1042
        %1059 = vst.msk [vmem:[#allocation3 + $0xb0] sm:$0xff] %vm691, %v1043
        %1060 = vst.msk [vmem:[#allocation3 + $0xc8] sm:$0xff] %vm691, %v1044
        %1061 = vst.msk [vmem:[#allocation3 + $0xe0] sm:$0xff] %vm691, %v1045
        %1062 = vst.msk [vmem:[#allocation3 + $0xf8] sm:$0xff] %vm691, %v1046
        %1063 = vst.msk [vmem:[#allocation3 + $0x110] sm:$0xff] %vm691, %v1047
        %1064 = vst.msk [vmem:[#allocation3 + $0x128] sm:$0xff] %vm691, %v1048
        %1065 = vst.msk [vmem:[#allocation3 + $0x140] sm:$0xff] %vm691, %v1049
        %1066 = vst.msk [vmem:[#allocation3 + $0x158] sm:$0xff] %vm691, %v1050
        %1067 = vst.msk [vmem:[#allocation3 + $0x170] sm:$0xff] %vm691, %v1051
        %v1068 = vld [vmem:[%s938 + $0x2] sm:$0xff]
        %v1069 = vld [vmem:[%s938 + $0xa] sm:$0xff]
        %v1070 = vld [vmem:[%s938 + $0x1a] sm:$0xff]
        %v1071 = vld [vmem:[%s938 + $0x22] sm:$0xff]
        %v1072 = vld [vmem:[%s938 + $0x32] sm:$0xff]
        %v1073 = vld [vmem:[%s938 + $0x3a] sm:$0xff]
        %v1074 = vld [vmem:[%s938 + $0x4a] sm:$0xff]
        %v1075 = vld [vmem:[%s938 + $0x52] sm:$0xff]
        %v1076 = vld [vmem:[%s938 + $0x62] sm:$0xff]
        %v1077 = vld [vmem:[%s938 + $0x6a] sm:$0xff]
        %v1078 = vld [vmem:[%s938 + $0x7a] sm:$0xff]
        %v1079 = vld [vmem:[%s938 + $0x82] sm:$0xff]
        %v1080 = vld [vmem:[%s938 + $0x92] sm:$0xff]
        %v1081 = vld [vmem:[%s938 + $0x9a] sm:$0xff]
        %v1082 = vld [vmem:[%s938 + $0xaa] sm:$0xff]
        %v1083 = vld [vmem:[%s938 + $0xb2] sm:$0xff]
        %1100 = vrot.lane.b32.xlu0 %v1068, 32
        %v1101 = vpop.permute.xlu0 %1100
        %1102 = vrot.lane.b32.xlu0 %v1069, 32
        %v1103 = vpop.permute.xlu0 %1102
        %1104 = vrot.lane.b32.xlu0 %v1070, 32
        %v1105 = vpop.permute.xlu0 %1104
        %1106 = vrot.lane.b32.xlu0 %v1071, 32
        %v1107 = vpop.permute.xlu0 %1106
        %1108 = vrot.lane.b32.xlu0 %v1072, 32
        %v1109 = vpop.permute.xlu0 %1108
        %1110 = vrot.lane.b32.xlu0 %v1073, 32
        %v1111 = vpop.permute.xlu0 %1110
        %1112 = vrot.lane.b32.xlu0 %v1074, 32
        %v1113 = vpop.permute.xlu0 %1112
        %1114 = vrot.lane.b32.xlu0 %v1075, 32
        %v1115 = vpop.permute.xlu0 %1114
        %1116 = vrot.lane.b32.xlu0 %v1076, 32
        %v1117 = vpop.permute.xlu0 %1116
        %1118 = vrot.lane.b32.xlu0 %v1077, 32
        %v1119 = vpop.permute.xlu0 %1118
        %1120 = vrot.lane.b32.xlu0 %v1078, 32
        %v1121 = vpop.permute.xlu0 %1120
        %1122 = vrot.lane.b32.xlu0 %v1079, 32
        %v1123 = vpop.permute.xlu0 %1122
        %1124 = vrot.lane.b32.xlu0 %v1080, 32
        %v1125 = vpop.permute.xlu0 %1124
        %1126 = vrot.lane.b32.xlu0 %v1081, 32
        %v1127 = vpop.permute.xlu0 %1126
        %1128 = vrot.lane.b32.xlu0 %v1082, 32
        %v1129 = vpop.permute.xlu0 %1128
        %1130 = vrot.lane.b32.xlu0 %v1083, 32
        %v1131 = vpop.permute.xlu0 %1130
        %1148 = vst.msk [vmem:[#allocation3 + $0x8] sm:$0xff] %vm824, %v1101
        %1149 = vst.msk [vmem:[#allocation3 + $0x20] sm:$0xff] %vm824, %v1103
        %1150 = vst.msk [vmem:[#allocation3 + $0x38] sm:$0xff] %vm824, %v1105
        %1151 = vst.msk [vmem:[#allocation3 + $0x50] sm:$0xff] %vm824, %v1107
        %1152 = vst.msk [vmem:[#allocation3 + $0x68] sm:$0xff] %vm824, %v1109
        %1153 = vst.msk [vmem:[#allocation3 + $0x80] sm:$0xff] %vm824, %v1111
        %1154 = vst.msk [vmem:[#allocation3 + $0x98] sm:$0xff] %vm824, %v1113
        %1155 = vst.msk [vmem:[#allocation3 + $0xb0] sm:$0xff] %vm824, %v1115
        %1156 = vst.msk [vmem:[#allocation3 + $0xc8] sm:$0xff] %vm824, %v1117
        %1157 = vst.msk [vmem:[#allocation3 + $0xe0] sm:$0xff] %vm824, %v1119
        %1158 = vst.msk [vmem:[#allocation3 + $0xf8] sm:$0xff] %vm824, %v1121
        %1159 = vst.msk [vmem:[#allocation3 + $0x110] sm:$0xff] %vm824, %v1123
        %1160 = vst.msk [vmem:[#allocation3 + $0x128] sm:$0xff] %vm824, %v1125
        %1161 = vst.msk [vmem:[#allocation3 + $0x140] sm:$0xff] %vm824, %v1127
        %1162 = vst.msk [vmem:[#allocation3 + $0x158] sm:$0xff] %vm824, %v1129
        %1163 = vst.msk [vmem:[#allocation3 + $0x170] sm:$0xff] %vm824, %v1131
        %s1164 = scalar_lea.vmem [#allocation2], 48
        %v1165 = vld [vmem:[%s1164] sm:$0xff]
        %v1166 = vld [vmem:[%s1164 + $0x8] sm:$0xff]
        %v1167 = vld [vmem:[%s1164 + $0x18] sm:$0xff]
        %v1168 = vld [vmem:[%s1164 + $0x20] sm:$0xff]
        %v1169 = vld [vmem:[%s1164 + $0x30] sm:$0xff]
        %v1170 = vld [vmem:[%s1164 + $0x38] sm:$0xff]
        %v1171 = vld [vmem:[%s1164 + $0x48] sm:$0xff]
        %v1172 = vld [vmem:[%s1164 + $0x50] sm:$0xff]
        %v1173 = vld [vmem:[%s1164 + $0x60] sm:$0xff]
        %v1174 = vld [vmem:[%s1164 + $0x68] sm:$0xff]
        %v1175 = vld [vmem:[%s1164 + $0x78] sm:$0xff]
        %v1176 = vld [vmem:[%s1164 + $0x80] sm:$0xff]
        %v1177 = vld [vmem:[%s1164 + $0x90] sm:$0xff]
        %v1178 = vld [vmem:[%s1164 + $0x98] sm:$0xff]
        %v1179 = vld [vmem:[%s1164 + $0xa8] sm:$0xff]
        %v1180 = vld [vmem:[%s1164 + $0xb0] sm:$0xff]
        %1197 = vrot.lane.b32.xlu0 %v1165, 64
        %v1198 = vpop.permute.xlu0 %1197
        %1199 = vrot.lane.b32.xlu0 %v1166, 64
        %v1200 = vpop.permute.xlu0 %1199
        %1201 = vrot.lane.b32.xlu0 %v1167, 64
        %v1202 = vpop.permute.xlu0 %1201
        %1203 = vrot.lane.b32.xlu0 %v1168, 64
        %v1204 = vpop.permute.xlu0 %1203
        %1205 = vrot.lane.b32.xlu0 %v1169, 64
        %v1206 = vpop.permute.xlu0 %1205
        %1207 = vrot.lane.b32.xlu0 %v1170, 64
        %v1208 = vpop.permute.xlu0 %1207
        %1209 = vrot.lane.b32.xlu0 %v1171, 64
        %v1210 = vpop.permute.xlu0 %1209
        %1211 = vrot.lane.b32.xlu0 %v1172, 64
        %v1212 = vpop.permute.xlu0 %1211
        %1213 = vrot.lane.b32.xlu0 %v1173, 64
        %v1214 = vpop.permute.xlu0 %1213
        %1215 = vrot.lane.b32.xlu0 %v1174, 64
        %v1216 = vpop.permute.xlu0 %1215
        %1217 = vrot.lane.b32.xlu0 %v1175, 64
        %v1218 = vpop.permute.xlu0 %1217
        %1219 = vrot.lane.b32.xlu0 %v1176, 64
        %v1220 = vpop.permute.xlu0 %1219
        %1221 = vrot.lane.b32.xlu0 %v1177, 64
        %v1222 = vpop.permute.xlu0 %1221
        %1223 = vrot.lane.b32.xlu0 %v1178, 64
        %v1224 = vpop.permute.xlu0 %1223
        %1225 = vrot.lane.b32.xlu0 %v1179, 64
        %v1226 = vpop.permute.xlu0 %1225
        %1227 = vrot.lane.b32.xlu0 %v1180, 64
        %v1228 = vpop.permute.xlu0 %1227
        %1245 = vst.msk [vmem:[#allocation3 + $0x8] sm:$0xff] %vm921, %v1198
        %1246 = vst.msk [vmem:[#allocation3 + $0x20] sm:$0xff] %vm921, %v1200
        %1247 = vst.msk [vmem:[#allocation3 + $0x38] sm:$0xff] %vm921, %v1202
        %1248 = vst.msk [vmem:[#allocation3 + $0x50] sm:$0xff] %vm921, %v1204
        %1249 = vst.msk [vmem:[#allocation3 + $0x68] sm:$0xff] %vm921, %v1206
        %1250 = vst.msk [vmem:[#allocation3 + $0x80] sm:$0xff] %vm921, %v1208
        %1251 = vst.msk [vmem:[#allocation3 + $0x98] sm:$0xff] %vm921, %v1210
        %1252 = vst.msk [vmem:[#allocation3 + $0xb0] sm:$0xff] %vm921, %v1212
        %1253 = vst.msk [vmem:[#allocation3 + $0xc8] sm:$0xff] %vm921, %v1214
        %1254 = vst.msk [vmem:[#allocation3 + $0xe0] sm:$0xff] %vm921, %v1216
        %1255 = vst.msk [vmem:[#allocation3 + $0xf8] sm:$0xff] %vm921, %v1218
        %1256 = vst.msk [vmem:[#allocation3 + $0x110] sm:$0xff] %vm921, %v1220
        %1257 = vst.msk [vmem:[#allocation3 + $0x128] sm:$0xff] %vm921, %v1222
        %1258 = vst.msk [vmem:[#allocation3 + $0x140] sm:$0xff] %vm921, %v1224
        %1259 = vst.msk [vmem:[#allocation3 + $0x158] sm:$0xff] %vm921, %v1226
        %1260 = vst.msk [vmem:[#allocation3 + $0x170] sm:$0xff] %vm921, %v1228
        %v1261 = vld [vmem:[%s1164 + $0x1] sm:$0xff]
        %v1262 = vld [vmem:[%s1164 + $0x9] sm:$0xff]
        %v1263 = vld [vmem:[%s1164 + $0x19] sm:$0xff]
        %v1264 = vld [vmem:[%s1164 + $0x21] sm:$0xff]
        %v1265 = vld [vmem:[%s1164 + $0x31] sm:$0xff]
        %v1266 = vld [vmem:[%s1164 + $0x39] sm:$0xff]
        %v1267 = vld [vmem:[%s1164 + $0x49] sm:$0xff]
        %v1268 = vld [vmem:[%s1164 + $0x51] sm:$0xff]
        %v1269 = vld [vmem:[%s1164 + $0x61] sm:$0xff]
        %v1270 = vld [vmem:[%s1164 + $0x69] sm:$0xff]
        %v1271 = vld [vmem:[%s1164 + $0x79] sm:$0xff]
        %v1272 = vld [vmem:[%s1164 + $0x81] sm:$0xff]
        %v1273 = vld [vmem:[%s1164 + $0x91] sm:$0xff]
        %v1274 = vld [vmem:[%s1164 + $0x99] sm:$0xff]
        %v1275 = vld [vmem:[%s1164 + $0xa9] sm:$0xff]
        %v1276 = vld [vmem:[%s1164 + $0xb1] sm:$0xff]
        %1293 = vrot.lane.b32.xlu0 %v1261, 96
        %v1294 = vpop.permute.xlu0 %1293
        %1295 = vrot.lane.b32.xlu0 %v1262, 96
        %v1296 = vpop.permute.xlu0 %1295
        %1297 = vrot.lane.b32.xlu0 %v1263, 96
        %v1298 = vpop.permute.xlu0 %1297
        %1299 = vrot.lane.b32.xlu0 %v1264, 96
        %v1300 = vpop.permute.xlu0 %1299
        %1301 = vrot.lane.b32.xlu0 %v1265, 96
        %v1302 = vpop.permute.xlu0 %1301
        %1303 = vrot.lane.b32.xlu0 %v1266, 96
        %v1304 = vpop.permute.xlu0 %1303
        %1305 = vrot.lane.b32.xlu0 %v1267, 96
        %v1306 = vpop.permute.xlu0 %1305
        %1307 = vrot.lane.b32.xlu0 %v1268, 96
        %v1308 = vpop.permute.xlu0 %1307
        %1309 = vrot.lane.b32.xlu0 %v1269, 96
        %v1310 = vpop.permute.xlu0 %1309
        %1311 = vrot.lane.b32.xlu0 %v1270, 96
        %v1312 = vpop.permute.xlu0 %1311
        %1313 = vrot.lane.b32.xlu0 %v1271, 96
        %v1314 = vpop.permute.xlu0 %1313
        %1315 = vrot.lane.b32.xlu0 %v1272, 96
        %v1316 = vpop.permute.xlu0 %1315
        %1317 = vrot.lane.b32.xlu0 %v1273, 96
        %v1318 = vpop.permute.xlu0 %1317
        %1319 = vrot.lane.b32.xlu0 %v1274, 96
        %v1320 = vpop.permute.xlu0 %1319
        %1321 = vrot.lane.b32.xlu0 %v1275, 96
        %v1322 = vpop.permute.xlu0 %1321
        %1323 = vrot.lane.b32.xlu0 %v1276, 96
        %v1324 = vpop.permute.xlu0 %1323
        %1341 = vst.msk [vmem:[#allocation3 + $0x8] sm:$0xff] %vm1019, %v1294
        %1342 = vst.msk [vmem:[#allocation3 + $0x20] sm:$0xff] %vm1019, %v1296
        %1343 = vst.msk [vmem:[#allocation3 + $0x38] sm:$0xff] %vm1019, %v1298
        %1344 = vst.msk [vmem:[#allocation3 + $0x50] sm:$0xff] %vm1019, %v1300
        %1345 = vst.msk [vmem:[#allocation3 + $0x68] sm:$0xff] %vm1019, %v1302
        %1346 = vst.msk [vmem:[#allocation3 + $0x80] sm:$0xff] %vm1019, %v1304
        %1347 = vst.msk [vmem:[#allocation3 + $0x98] sm:$0xff] %vm1019, %v1306
        %1348 = vst.msk [vmem:[#allocation3 + $0xb0] sm:$0xff] %vm1019, %v1308
        %1349 = vst.msk [vmem:[#allocation3 + $0xc8] sm:$0xff] %vm1019, %v1310
        %1350 = vst.msk [vmem:[#allocation3 + $0xe0] sm:$0xff] %vm1019, %v1312
        %1351 = vst.msk [vmem:[#allocation3 + $0xf8] sm:$0xff] %vm1019, %v1314
        %1352 = vst.msk [vmem:[#allocation3 + $0x110] sm:$0xff] %vm1019, %v1316
        %1353 = vst.msk [vmem:[#allocation3 + $0x128] sm:$0xff] %vm1019, %v1318
        %1354 = vst.msk [vmem:[#allocation3 + $0x140] sm:$0xff] %vm1019, %v1320
        %1355 = vst.msk [vmem:[#allocation3 + $0x158] sm:$0xff] %vm1019, %v1322
        %1356 = vst.msk [vmem:[#allocation3 + $0x170] sm:$0xff] %vm1019, %v1324
        %v1357 = vld [vmem:[%s1164 + $0x2] sm:$0xff]
        %v1358 = vld [vmem:[%s1164 + $0xa] sm:$0xff]
        %v1359 = vld [vmem:[%s1164 + $0x1a] sm:$0xff]
        %v1360 = vld [vmem:[%s1164 + $0x22] sm:$0xff]
        %v1361 = vld [vmem:[%s1164 + $0x32] sm:$0xff]
        %v1362 = vld [vmem:[%s1164 + $0x3a] sm:$0xff]
        %v1363 = vld [vmem:[%s1164 + $0x4a] sm:$0xff]
        %v1364 = vld [vmem:[%s1164 + $0x52] sm:$0xff]
        %v1365 = vld [vmem:[%s1164 + $0x62] sm:$0xff]
        %v1366 = vld [vmem:[%s1164 + $0x6a] sm:$0xff]
        %v1367 = vld [vmem:[%s1164 + $0x7a] sm:$0xff]
        %v1368 = vld [vmem:[%s1164 + $0x82] sm:$0xff]
        %v1369 = vld [vmem:[%s1164 + $0x92] sm:$0xff]
        %v1370 = vld [vmem:[%s1164 + $0x9a] sm:$0xff]
        %v1371 = vld [vmem:[%s1164 + $0xaa] sm:$0xff]
        %v1372 = vld [vmem:[%s1164 + $0xb2] sm:$0xff]
        %1373 = vst.msk [vmem:[#allocation3 + $0x10] sm:$0xff] %vm691, %v1357
        %1374 = vst.msk [vmem:[#allocation3 + $0x28] sm:$0xff] %vm691, %v1358
        %1375 = vst.msk [vmem:[#allocation3 + $0x40] sm:$0xff] %vm691, %v1359
        %1376 = vst.msk [vmem:[#allocation3 + $0x58] sm:$0xff] %vm691, %v1360
        %1377 = vst.msk [vmem:[#allocation3 + $0x70] sm:$0xff] %vm691, %v1361
        %1378 = vst.msk [vmem:[#allocation3 + $0x88] sm:$0xff] %vm691, %v1362
        %1379 = vst.msk [vmem:[#allocation3 + $0xa0] sm:$0xff] %vm691, %v1363
        %1380 = vst.msk [vmem:[#allocation3 + $0xb8] sm:$0xff] %vm691, %v1364
        %1381 = vst.msk [vmem:[#allocation3 + $0xd0] sm:$0xff] %vm691, %v1365
        %1382 = vst.msk [vmem:[#allocation3 + $0xe8] sm:$0xff] %vm691, %v1366
        %1383 = vst.msk [vmem:[#allocation3 + $0x100] sm:$0xff] %vm691, %v1367
        %1384 = vst.msk [vmem:[#allocation3 + $0x118] sm:$0xff] %vm691, %v1368
        %1385 = vst.msk [vmem:[#allocation3 + $0x130] sm:$0xff] %vm691, %v1369
        %1386 = vst.msk [vmem:[#allocation3 + $0x148] sm:$0xff] %vm691, %v1370
        %1387 = vst.msk [vmem:[#allocation3 + $0x160] sm:$0xff] %vm691, %v1371
        %1388 = vst.msk [vmem:[#allocation3 + $0x178] sm:$0xff] %vm691, %v1372
        %v1389 = vld [vmem:[#allocation3] sm:$0xff]
        %v1390 = vld [vmem:[#allocation3 + $0x8] sm:$0xff]
        %v1391 = vld [vmem:[#allocation3 + $0x10] sm:$0xff]
        %v1392 = vld [vmem:[#allocation3 + $0x18] sm:$0xff]
        %v1393 = vld [vmem:[#allocation3 + $0x20] sm:$0xff]
        %v1394 = vld [vmem:[#allocation3 + $0x28] sm:$0xff]
        %v1395 = vld [vmem:[#allocation3 + $0x30] sm:$0xff]
        %v1396 = vld [vmem:[#allocation3 + $0x38] sm:$0xff]
        %v1397 = vld [vmem:[#allocation3 + $0x40] sm:$0xff]
        %v1398 = vld [vmem:[#allocation3 + $0x48] sm:$0xff]
        %v1399 = vld [vmem:[#allocation3 + $0x50] sm:$0xff]
        %v1400 = vld [vmem:[#allocation3 + $0x58] sm:$0xff]
        %v1401 = vld [vmem:[#allocation3 + $0x60] sm:$0xff]
        %v1402 = vld [vmem:[#allocation3 + $0x68] sm:$0xff]
        %v1403 = vld [vmem:[#allocation3 + $0x70] sm:$0xff]
        %v1404 = vld [vmem:[#allocation3 + $0x78] sm:$0xff]
        %v1405 = vld [vmem:[#allocation3 + $0x80] sm:$0xff]
        %v1406 = vld [vmem:[#allocation3 + $0x88] sm:$0xff]
        %v1407 = vld [vmem:[#allocation3 + $0x90] sm:$0xff]
        %v1408 = vld [vmem:[#allocation3 + $0x98] sm:$0xff]
        %v1409 = vld [vmem:[#allocation3 + $0xa0] sm:$0xff]
        %v1410 = vld [vmem:[#allocation3 + $0xa8] sm:$0xff]
        %v1411 = vld [vmem:[#allocation3 + $0xb0] sm:$0xff]
        %v1412 = vld [vmem:[#allocation3 + $0xb8] sm:$0xff]
        %v1413 = vld [vmem:[#allocation3 + $0xc0] sm:$0xff]
        %v1414 = vld [vmem:[#allocation3 + $0xc8] sm:$0xff]
        %v1415 = vld [vmem:[#allocation3 + $0xd0] sm:$0xff]
        %v1416 = vld [vmem:[#allocation3 + $0xd8] sm:$0xff]
        %v1417 = vld [vmem:[#allocation3 + $0xe0] sm:$0xff]
        %v1418 = vld [vmem:[#allocation3 + $0xe8] sm:$0xff]
        %v1419 = vld [vmem:[#allocation3 + $0xf0] sm:$0xff]
        %v1420 = vld [vmem:[#allocation3 + $0xf8] sm:$0xff]
        %v1421 = vld [vmem:[#allocation3 + $0x100] sm:$0xff]
        %v1422 = vld [vmem:[#allocation3 + $0x108] sm:$0xff]
        %v1423 = vld [vmem:[#allocation3 + $0x110] sm:$0xff]
        %v1424 = vld [vmem:[#allocation3 + $0x118] sm:$0xff]
        %v1425 = vld [vmem:[#allocation3 + $0x120] sm:$0xff]
        %v1426 = vld [vmem:[#allocation3 + $0x128] sm:$0xff]
        %v1427 = vld [vmem:[#allocation3 + $0x130] sm:$0xff]
        %v1428 = vld [vmem:[#allocation3 + $0x138] sm:$0xff]
        %v1429 = vld [vmem:[#allocation3 + $0x140] sm:$0xff]
        %v1430 = vld [vmem:[#allocation3 + $0x148] sm:$0xff]
        %v1431 = vld [vmem:[#allocation3 + $0x150] sm:$0xff]
        %v1432 = vld [vmem:[#allocation3 + $0x158] sm:$0xff]
        %v1433 = vld [vmem:[#allocation3 + $0x160] sm:$0xff]
        %v1434 = vld [vmem:[#allocation3 + $0x168] sm:$0xff]
        %v1435 = vld [vmem:[#allocation3 + $0x170] sm:$0xff]
        %v1436 = vld [vmem:[#allocation3 + $0x178] sm:$0xff]
        %v1437 = vld [vmem:[%s3] sm:$0xff]
        %v1438 = vld [vmem:[%s3 + $0x8] sm:$0xff]
        %v1439 = vld [vmem:[%s3 + $0x10] sm:$0xff]
        %v1440 = vld [vmem:[%s3 + $0x18] sm:$0xff]
        %v1441 = vld [vmem:[%s3 + $0x20] sm:$0xff]
        %v1442 = vld [vmem:[%s3 + $0x28] sm:$0xff]
        %v1443 = vld [vmem:[%s3 + $0x30] sm:$0xff]
        %v1444 = vld [vmem:[%s3 + $0x38] sm:$0xff]
        %v1445 = vld [vmem:[%s3 + $0x40] sm:$0xff]
        %v1446 = vld [vmem:[%s3 + $0x48] sm:$0xff]
        %v1447 = vld [vmem:[%s3 + $0x50] sm:$0xff]
        %v1448 = vld [vmem:[%s3 + $0x58] sm:$0xff]
        %v1449 = vld [vmem:[%s3 + $0x60] sm:$0xff]
        %v1450 = vld [vmem:[%s3 + $0x68] sm:$0xff]
        %v1451 = vld [vmem:[%s3 + $0x70] sm:$0xff]
        %v1452 = vld [vmem:[%s3 + $0x78] sm:$0xff]
        %v1453 = vld [vmem:[%s3 + $0x80] sm:$0xff]
        %v1454 = vld [vmem:[%s3 + $0x88] sm:$0xff]
        %v1455 = vld [vmem:[%s3 + $0x90] sm:$0xff]
        %v1456 = vld [vmem:[%s3 + $0x98] sm:$0xff]
        %v1457 = vld [vmem:[%s3 + $0xa0] sm:$0xff]
        %v1458 = vld [vmem:[%s3 + $0xa8] sm:$0xff]
        %v1459 = vld [vmem:[%s3 + $0xb0] sm:$0xff]
        %v1460 = vld [vmem:[%s3 + $0xb8] sm:$0xff]
        %v1461 = vld [vmem:[%s3 + $0xc0] sm:$0xff]
        %v1462 = vld [vmem:[%s3 + $0xc8] sm:$0xff]
        %v1463 = vld [vmem:[%s3 + $0xd0] sm:$0xff]
        %v1464 = vld [vmem:[%s3 + $0xd8] sm:$0xff]
        %v1465 = vld [vmem:[%s3 + $0xe0] sm:$0xff]
        %v1466 = vld [vmem:[%s3 + $0xe8] sm:$0xff]
        %v1467 = vld [vmem:[%s3 + $0xf0] sm:$0xff]
        %v1468 = vld [vmem:[%s3 + $0xf8] sm:$0xff]
        %v1469 = vld [vmem:[%s3 + $0x100] sm:$0xff]
        %v1470 = vld [vmem:[%s3 + $0x108] sm:$0xff]
        %v1471 = vld [vmem:[%s3 + $0x110] sm:$0xff]
        %v1472 = vld [vmem:[%s3 + $0x118] sm:$0xff]
        %v1473 = vld [vmem:[%s4] sm:$0x1]
        %v1475 = vlaneseq
        %v1476 = vshrl.u32 %v1475, 7
        %v1477 = vsub.s32 0, %v1476
        %v1478 = vrot.slane %v1473, %v1477
        %v1481 = vsel %vm691, %v1391, 0
        %v1484 = vsel %vm691, %v1394, 0
        %v1487 = vsel %vm691, %v1397, 0
        %v1490 = vsel %vm691, %v1400, 0
        %v1493 = vsel %vm691, %v1403, 0
        %v1496 = vsel %vm691, %v1406, 0
        %v1499 = vsel %vm691, %v1409, 0
        %v1502 = vsel %vm691, %v1412, 0
        %v1505 = vsel %vm691, %v1415, 0
        %v1508 = vsel %vm691, %v1418, 0
        %v1511 = vsel %vm691, %v1421, 0
        %v1514 = vsel %vm691, %v1424, 0
        %v1517 = vsel %vm691, %v1427, 0
        %v1520 = vsel %vm691, %v1430, 0
        %v1523 = vsel %vm691, %v1433, 0
        %v1526 = vsel %vm691, %v1436, 0
        %1528 = vmatprep.subr.mxu0 0.0
        %1529 = vmatpush1.msra.mxu0 %v1437
        %1530 = vmatprep.subr.mxu0 0.0
        %1531 = vmatpush1.msra.mxu0 %v1438
        %1532 = vmatprep.subr.mxu0 0.0
        %1533 = vmatpush1.msra.mxu0 %v1439
        %1534 = vmatprep.subr.mxu0 0.0
        %1535 = vmatpush1.msra.mxu0 %v1440
        %1536 = vmatprep.subr.mxu0 0.0
        %1537 = vmatpush1.msra.mxu0 %v1441
        %1538 = vmatprep.subr.mxu0 0.0
        %1539 = vmatpush1.msra.mxu0 %v1442
        %1540 = vmatprep.subr.mxu0 0.0
        %1541 = vmatpush1.msra.mxu0 %v1443
        %1542 = vmatprep.subr.mxu0 0.0
        %1543 = vmatpush1.msra.mxu0 %v1444
        %1544 = vmatprep.subr.mxu0 0.0
        %1545 = vmatpush1.msra.mxu0 %v1445
        %1546 = vmatprep.subr.mxu0 0.0
        %1547 = vmatpush1.msra.mxu0 %v1446
        %1548 = vmatprep.subr.mxu0 0.0
        %1549 = vmatpush1.msra.mxu0 %v1447
        %1550 = vmatprep.subr.mxu0 0.0
        %1551 = vmatpush1.msra.mxu0 %v1448
        %1552 = vmatprep.subr.mxu0 0.0
        %1553 = vmatpush1.msra.mxu0 %v1449
        %1554 = vmatprep.subr.mxu0 0.0
        %1555 = vmatpush1.msra.mxu0 %v1450
        %1556 = vmatprep.subr.mxu0 0.0
        %1557 = vmatpush1.msra.mxu0 %v1451
        %1558 = vmatprep.subr.mxu0 0.0
        %1559 = vmatpush1.msra.mxu0 %v1452
        %1560 = vmatprep.subr.mxu0 0.0
        %1561 = vmatpush1.msra.mxu0 %v1453
        %1562 = vmatprep.subr.mxu0 0.0
        %1563 = vmatpush1.msra.mxu0 %v1454
        %1564 = vmatprep.subr.mxu0 0.0
        %1565 = vmatpush1.msra.mxu0 %v1455
        %1566 = vmatprep.subr.mxu0 0.0
        %1567 = vmatpush1.msra.mxu0 %v1456
        %1568 = vmatprep.subr.mxu0 0.0
        %1569 = vmatpush1.msra.mxu0 %v1457
        %1570 = vmatprep.subr.mxu0 0.0
        %1571 = vmatpush1.msra.mxu0 %v1458
        %1572 = vmatprep.subr.mxu0 0.0
        %1573 = vmatpush1.msra.mxu0 %v1459
        %1574 = vmatprep.subr.mxu0 0.0
        %1575 = vmatpush1.msra.mxu0 %v1460
        %1576 = vmatprep.subr.mxu0 0.0
        %1577 = vmatpush1.msra.mxu0 %v1461
        %1578 = vmatprep.subr.mxu0 0.0
        %1579 = vmatpush1.msra.mxu0 %v1462
        %1580 = vmatprep.subr.mxu0 0.0
        %1581 = vmatpush1.msra.mxu0 %v1463
        %1582 = vmatprep.subr.mxu0 0.0
        %1583 = vmatpush1.msra.mxu0 %v1464
        %1584 = vmatprep.subr.mxu0 0.0
        %1585 = vmatpush1.msra.mxu0 %v1465
        %1586 = vmatprep.subr.mxu0 0.0
        %1587 = vmatpush1.msra.mxu0 %v1466
        %1588 = vmatprep.subr.mxu0 0.0
        %1589 = vmatpush1.msra.mxu0 %v1467
        %1590 = vmatprep.subr.mxu0 0.0
        %1591 = vmatpush1.msra.mxu0 %v1468
        %1592 = vmatprep.mubr.f32.mxu0 %v1390
        %1593 = vmatmul.mubr.f32.gmra.mrb[0].mxu0 %v1389
        %v1594 = vpop.f32.mrb[0].mxu0
        %v1595 = vadd.f32 %v1478, %v1594
        %v1596 = vpop.f32.mrb[0].mxu0
        %1597 = vmatprep.mubr.f32.mxu0 %v1393
        %1598 = vmatmul.mubr.f32.gmra.mrb[0].mxu0 %v1392
        %v1599 = vpop.f32.mrb[0].mxu0
        %v1600 = vadd.f32 %v1478, %v1599
        %v1601 = vpop.f32.mrb[0].mxu0
        %1602 = vmatprep.mubr.f32.mxu0 %v1396
        %1603 = vmatmul.mubr.f32.gmra.mrb[0].mxu0 %v1395
        %v1604 = vpop.f32.mrb[0].mxu0
        %v1605 = vadd.f32 %v1478, %v1604
        %v1606 = vpop.f32.mrb[0].mxu0
        %1607 = vmatprep.mubr.f32.mxu0 %v1399
        %1608 = vmatmul.mubr.f32.gmra.mrb[0].mxu0 %v1398
        %v1609 = vpop.f32.mrb[0].mxu0
        %v1610 = vadd.f32 %v1478, %v1609
        %v1611 = vpop.f32.mrb[0].mxu0
        %1612 = vmatprep.mubr.f32.mxu0 %v1402
        %1613 = vmatmul.mubr.f32.gmra.mrb[0].mxu0 %v1401
        %v1614 = vpop.f32.mrb[0].mxu0
        %v1615 = vadd.f32 %v1478, %v1614
        %v1616 = vpop.f32.mrb[0].mxu0
        %1617 = vmatprep.mubr.f32.mxu0 %v1405
        %1618 = vmatmul.mubr.f32.gmra.mrb[0].mxu0 %v1404
        %v1619 = vpop.f32.mrb[0].mxu0
        %v1620 = vadd.f32 %v1478, %v1619
        %v1621 = vpop.f32.mrb[0].mxu0
        %1622 = vmatprep.mubr.f32.mxu0 %v1408
        %1623 = vmatmul.mubr.f32.gmra.mrb[0].mxu0 %v1407
        %v1624 = vpop.f32.mrb[0].mxu0
        %v1625 = vadd.f32 %v1478, %v1624
        %v1626 = vpop.f32.mrb[0].mxu0
        %1627 = vmatprep.mubr.f32.mxu0 %v1411
        %1628 = vmatmul.mubr.f32.gmra.mrb[0].mxu0 %v1410
        %v1629 = vpop.f32.mrb[0].mxu0
        %v1630 = vadd.f32 %v1478, %v1629
        %v1631 = vpop.f32.mrb[0].mxu0
        %1632 = vmatprep.mubr.f32.mxu0 %v1414
        %1633 = vmatmul.mubr.f32.gmra.mrb[0].mxu0 %v1413
        %v1634 = vpop.f32.mrb[0].mxu0
        %v1635 = vadd.f32 %v1478, %v1634
        %v1636 = vpop.f32.mrb[0].mxu0
        %1637 = vmatprep.mubr.f32.mxu0 %v1417
        %1638 = vmatmul.mubr.f32.gmra.mrb[0].mxu0 %v1416
        %v1639 = vpop.f32.mrb[0].mxu0
        %v1640 = vadd.f32 %v1478, %v1639
        %v1641 = vpop.f32.mrb[0].mxu0
        %1642 = vmatprep.mubr.f32.mxu0 %v1420
        %1643 = vmatmul.mubr.f32.gmra.mrb[0].mxu0 %v1419
        %v1644 = vpop.f32.mrb[0].mxu0
        %v1645 = vadd.f32 %v1478, %v1644
        %v1646 = vpop.f32.mrb[0].mxu0
        %1647 = vmatprep.mubr.f32.mxu0 %v1423
        %1648 = vmatmul.mubr.f32.gmra.mrb[0].mxu0 %v1422
        %v1649 = vpop.f32.mrb[0].mxu0
        %v1650 = vadd.f32 %v1478, %v1649
        %v1651 = vpop.f32.mrb[0].mxu0
        %1652 = vmatprep.mubr.f32.mxu0 %v1426
        %1653 = vmatmul.mubr.f32.gmra.mrb[0].mxu0 %v1425
        %v1654 = vpop.f32.mrb[0].mxu0
        %v1655 = vadd.f32 %v1478, %v1654
        %v1656 = vpop.f32.mrb[0].mxu0
        %1657 = vmatprep.mubr.f32.mxu0 %v1429
        %1658 = vmatmul.mubr.f32.gmra.mrb[0].mxu0 %v1428
        %v1659 = vpop.f32.mrb[0].mxu0
        %v1660 = vadd.f32 %v1478, %v1659
        %v1661 = vpop.f32.mrb[0].mxu0
        %1662 = vmatprep.mubr.f32.mxu0 %v1432
        %1663 = vmatmul.mubr.f32.gmra.mrb[0].mxu0 %v1431
        %v1664 = vpop.f32.mrb[0].mxu0
        %v1665 = vadd.f32 %v1478, %v1664
        %v1666 = vpop.f32.mrb[0].mxu0
        %1667 = vmatprep.mubr.f32.mxu0 %v1435
        %1668 = vmatmul.mubr.f32.gmra.mrb[0].mxu0 %v1434
        %v1669 = vpop.f32.mrb[0].mxu0
        %v1670 = vadd.f32 %v1478, %v1669
        %v1671 = vpop.f32.mrb[0].mxu0
        %1672 = vdwg.mxu0
        %1673 = vmatprep.subr.mxu0 0.0
        %1674 = vmatpush1.msra.mxu0 %v1469
        %1675 = vmatprep.subr.mxu0 0.0
        %1676 = vmatpush1.msra.mxu0 %v1470
        %1677 = vmatprep.subr.mxu0 0.0
        %1678 = vmatpush1.msra.mxu0 %v1471
        %1679 = vmatprep.subr.mxu0 0.0
        %1680 = vmatpush1.msra.mxu0 %v1472
        %1681 = vmatprep.subr.mxu0 0.0
        %1682 = vmatpush1.msra.mxu0 0.0
        %1683 = vmatprep.subr.mxu0 0.0
        %1684 = vmatpush1.msra.mxu0 0.0
        %1685 = vmatprep.subr.mxu0 0.0
        %1686 = vmatpush1.msra.mxu0 0.0
        %1687 = vmatprep.subr.mxu0 0.0
        %1688 = vmatpush1.msra.mxu0 0.0
        %1689 = vmatprep.subr.mxu0 0.0
        %1690 = vmatpush1.msra.mxu0 0.0
        %1691 = vmatprep.subr.mxu0 0.0
        %1692 = vmatpush1.msra.mxu0 0.0
        %1693 = vmatprep.subr.mxu0 0.0
        %1694 = vmatpush1.msra.mxu0 0.0
        %1695 = vmatprep.subr.mxu0 0.0
        %1696 = vmatpush1.msra.mxu0 0.0
        %1697 = vmatprep.subr.mxu0 0.0
        %1698 = vmatpush1.msra.mxu0 0.0
        %1699 = vmatprep.subr.mxu0 0.0
        %1700 = vmatpush1.msra.mxu0 0.0
        %1701 = vmatprep.subr.mxu0 0.0
        %1702 = vmatpush1.msra.mxu0 0.0
        %1703 = vmatprep.subr.mxu0 0.0
        %1704 = vmatpush1.msra.mxu0 0.0
        %1705 = vmatprep.subr.mxu0 0.0
        %1706 = vmatpush1.msra.mxu0 0.0
        %1707 = vmatprep.subr.mxu0 0.0
        %1708 = vmatpush1.msra.mxu0 0.0
        %1709 = vmatprep.subr.mxu0 0.0
        %1710 = vmatpush1.msra.mxu0 0.0
        %1711 = vmatprep.subr.mxu0 0.0
        %1712 = vmatpush1.msra.mxu0 0.0
        %1713 = vmatprep.subr.mxu0 0.0
        %1714 = vmatpush1.msra.mxu0 0.0
        %1715 = vmatprep.subr.mxu0 0.0
        %1716 = vmatpush1.msra.mxu0 0.0
        %1717 = vmatprep.subr.mxu0 0.0
        %1718 = vmatpush1.msra.mxu0 0.0
        %1719 = vmatprep.subr.mxu0 0.0
        %1720 = vmatpush1.msra.mxu0 0.0
        %1721 = vmatprep.subr.mxu0 0.0
        %1722 = vmatpush1.msra.mxu0 0.0
        %1723 = vmatprep.subr.mxu0 0.0
        %1724 = vmatpush1.msra.mxu0 0.0
        %1725 = vmatprep.subr.mxu0 0.0
        %1726 = vmatpush1.msra.mxu0 0.0
        %1727 = vmatprep.subr.mxu0 0.0
        %1728 = vmatpush1.msra.mxu0 0.0
        %1729 = vmatprep.subr.mxu0 0.0
        %1730 = vmatpush1.msra.mxu0 0.0
        %1731 = vmatprep.subr.mxu0 0.0
        %1732 = vmatpush1.msra.mxu0 0.0
        %1733 = vmatprep.subr.mxu0 0.0
        %1734 = vmatpush1.msra.mxu0 0.0
        %1735 = vmatprep.subr.mxu0 0.0
        %1736 = vmatpush1.msra.mxu0 0.0
        %1737 = vmatprep.mubr.f32.mxu0 0.0
        %1738 = vmatmul.mubr.f32.gmra.mrb[0].mxu0 %v1481
        %v1739 = vpop.f32.mrb[0].mxu0
        %v1740 = vadd.f32 %v1595, %v1739
        %v1741 = vpop.f32.mrb[0].mxu0
        %1742 = vmatprep.mubr.f32.mxu0 0.0
        %1743 = vmatmul.mubr.f32.gmra.mrb[0].mxu0 %v1484
        %v1744 = vpop.f32.mrb[0].mxu0
        %v1745 = vadd.f32 %v1600, %v1744
        %v1746 = vpop.f32.mrb[0].mxu0
        %1747 = vmatprep.mubr.f32.mxu0 0.0
        %1748 = vmatmul.mubr.f32.gmra.mrb[0].mxu0 %v1487
        %v1749 = vpop.f32.mrb[0].mxu0
        %v1750 = vadd.f32 %v1605, %v1749
        %v1751 = vpop.f32.mrb[0].mxu0
        %1752 = vmatprep.mubr.f32.mxu0 0.0
        %1753 = vmatmul.mubr.f32.gmra.mrb[0].mxu0 %v1490
        %v1754 = vpop.f32.mrb[0].mxu0
        %v1755 = vadd.f32 %v1610, %v1754
        %v1756 = vpop.f32.mrb[0].mxu0
        %1757 = vmatprep.mubr.f32.mxu0 0.0
        %1758 = vmatmul.mubr.f32.gmra.mrb[0].mxu0 %v1493
        %v1759 = vpop.f32.mrb[0].mxu0
        %v1760 = vadd.f32 %v1615, %v1759
        %v1761 = vpop.f32.mrb[0].mxu0
        %1762 = vmatprep.mubr.f32.mxu0 0.0
        %1763 = vmatmul.mubr.f32.gmra.mrb[0].mxu0 %v1496
        %v1764 = vpop.f32.mrb[0].mxu0
        %v1765 = vadd.f32 %v1620, %v1764
        %v1766 = vpop.f32.mrb[0].mxu0
        %1767 = vmatprep.mubr.f32.mxu0 0.0
        %1768 = vmatmul.mubr.f32.gmra.mrb[0].mxu0 %v1499
        %v1769 = vpop.f32.mrb[0].mxu0
        %v1770 = vadd.f32 %v1625, %v1769
        %v1771 = vpop.f32.mrb[0].mxu0
        %1772 = vmatprep.mubr.f32.mxu0 0.0
        %1773 = vmatmul.mubr.f32.gmra.mrb[0].mxu0 %v1502
        %v1774 = vpop.f32.mrb[0].mxu0
        %v1775 = vadd.f32 %v1630, %v1774
        %v1776 = vpop.f32.mrb[0].mxu0
        %1777 = vmatprep.mubr.f32.mxu0 0.0
        %1778 = vmatmul.mubr.f32.gmra.mrb[0].mxu0 %v1505
        %v1779 = vpop.f32.mrb[0].mxu0
        %v1780 = vadd.f32 %v1635, %v1779
        %v1781 = vpop.f32.mrb[0].mxu0
        %1782 = vmatprep.mubr.f32.mxu0 0.0
        %1783 = vmatmul.mubr.f32.gmra.mrb[0].mxu0 %v1508
        %v1784 = vpop.f32.mrb[0].mxu0
        %v1785 = vadd.f32 %v1640, %v1784
        %v1786 = vpop.f32.mrb[0].mxu0
        %1787 = vmatprep.mubr.f32.mxu0 0.0
        %1788 = vmatmul.mubr.f32.gmra.mrb[0].mxu0 %v1511
        %v1789 = vpop.f32.mrb[0].mxu0
        %v1790 = vadd.f32 %v1645, %v1789
        %v1791 = vpop.f32.mrb[0].mxu0
        %1792 = vmatprep.mubr.f32.mxu0 0.0
        %1793 = vmatmul.mubr.f32.gmra.mrb[0].mxu0 %v1514
        %v1794 = vpop.f32.mrb[0].mxu0
        %v1795 = vadd.f32 %v1650, %v1794
        %v1796 = vpop.f32.mrb[0].mxu0
        %1797 = vmatprep.mubr.f32.mxu0 0.0
        %1798 = vmatmul.mubr.f32.gmra.mrb[0].mxu0 %v1517
        %v1799 = vpop.f32.mrb[0].mxu0
        %v1800 = vadd.f32 %v1655, %v1799
        %v1801 = vpop.f32.mrb[0].mxu0
        %1802 = vmatprep.mubr.f32.mxu0 0.0
        %1803 = vmatmul.mubr.f32.gmra.mrb[0].mxu0 %v1520
        %v1804 = vpop.f32.mrb[0].mxu0
        %v1805 = vadd.f32 %v1660, %v1804
        %v1806 = vpop.f32.mrb[0].mxu0
        %1807 = vmatprep.mubr.f32.mxu0 0.0
        %1808 = vmatmul.mubr.f32.gmra.mrb[0].mxu0 %v1523
        %v1809 = vpop.f32.mrb[0].mxu0
        %v1810 = vadd.f32 %v1665, %v1809
        %v1811 = vpop.f32.mrb[0].mxu0
        %1812 = vmatprep.mubr.f32.mxu0 0.0
        %1813 = vmatmul.mubr.f32.gmra.mrb[0].mxu0 %v1526
        %v1814 = vpop.f32.mrb[0].mxu0
        %v1815 = vadd.f32 %v1670, %v1814
        %v1816 = vpop.f32.mrb[0].mxu0
        %1817 = vdwg.mxu0
        %v1818 = vmax.f32 %v1740, 0.0
        %v1819 = vmax.f32 %v1745, 0.0
        %v1820 = vmax.f32 %v1750, 0.0
        %v1821 = vmax.f32 %v1755, 0.0
        %v1822 = vmax.f32 %v1760, 0.0
        %v1823 = vmax.f32 %v1765, 0.0
        %v1824 = vmax.f32 %v1770, 0.0
        %v1825 = vmax.f32 %v1775, 0.0
        %v1826 = vmax.f32 %v1780, 0.0
        %v1827 = vmax.f32 %v1785, 0.0
        %v1828 = vmax.f32 %v1790, 0.0
        %v1829 = vmax.f32 %v1795, 0.0
        %v1830 = vmax.f32 %v1800, 0.0
        %v1831 = vmax.f32 %v1805, 0.0
        %v1832 = vmax.f32 %v1810, 0.0
        %v1833 = vmax.f32 %v1815, 0.0
        %v1834 = vld [vmem:[%s5] sm:$0xff]
        %v1835 = vld [vmem:[%s5 + $0x8] sm:$0xff]
        %v1836 = vld [vmem:[%s5 + $0x10] sm:$0xff]
        %v1837 = vld [vmem:[%s5 + $0x18] sm:$0xff]
        %v1838 = vld [vmem:[%s6] sm:$0x1]
        %v1840 = vlaneseq
        %v1841 = vshrl.u32 %v1840, 7
        %v1842 = vsub.s32 0, %v1841
        %v1843 = vrot.slane %v1838, %v1842
        %v1846 = vsel %vm691, %v1818, 0
        %v1849 = vsel %vm691, %v1819, 0
        %v1852 = vsel %vm691, %v1820, 0
        %v1855 = vsel %vm691, %v1821, 0
        %v1858 = vsel %vm691, %v1822, 0
        %v1861 = vsel %vm691, %v1823, 0
        %v1864 = vsel %vm691, %v1824, 0
        %v1867 = vsel %vm691, %v1825, 0
        %v1870 = vsel %vm691, %v1826, 0
        %v1873 = vsel %vm691, %v1827, 0
        %v1876 = vsel %vm691, %v1828, 0
        %v1879 = vsel %vm691, %v1829, 0
        %v1882 = vsel %vm691, %v1830, 0
        %v1885 = vsel %vm691, %v1831, 0
        %v1888 = vsel %vm691, %v1832, 0
        %v1891 = vsel %vm691, %v1833, 0
        %1893 = vmatprep.subr.mxu0 0.0
        %1894 = vmatpush1.msra.mxu0 %v1834
        %1895 = vmatprep.subr.mxu0 0.0
        %1896 = vmatpush1.msra.mxu0 %v1835
        %1897 = vmatprep.subr.mxu0 0.0
        %1898 = vmatpush1.msra.mxu0 %v1836
        %1899 = vmatprep.subr.mxu0 0.0
        %1900 = vmatpush1.msra.mxu0 %v1837
        %1901 = vmatprep.subr.mxu0 0.0
        %1902 = vmatpush1.msra.mxu0 0.0
        %1903 = vmatprep.subr.mxu0 0.0
        %1904 = vmatpush1.msra.mxu0 0.0
        %1905 = vmatprep.subr.mxu0 0.0
        %1906 = vmatpush1.msra.mxu0 0.0
        %1907 = vmatprep.subr.mxu0 0.0
        %1908 = vmatpush1.msra.mxu0 0.0
        %1909 = vmatprep.subr.mxu0 0.0
        %1910 = vmatpush1.msra.mxu0 0.0
        %1911 = vmatprep.subr.mxu0 0.0
        %1912 = vmatpush1.msra.mxu0 0.0
        %1913 = vmatprep.subr.mxu0 0.0
        %1914 = vmatpush1.msra.mxu0 0.0
        %1915 = vmatprep.subr.mxu0 0.0
        %1916 = vmatpush1.msra.mxu0 0.0
        %1917 = vmatprep.subr.mxu0 0.0
        %1918 = vmatpush1.msra.mxu0 0.0
        %1919 = vmatprep.subr.mxu0 0.0
        %1920 = vmatpush1.msra.mxu0 0.0
        %1921 = vmatprep.subr.mxu0 0.0
        %1922 = vmatpush1.msra.mxu0 0.0
        %1923 = vmatprep.subr.mxu0 0.0
        %1924 = vmatpush1.msra.mxu0 0.0
        %1925 = vmatprep.subr.mxu0 0.0
        %1926 = vmatpush1.msra.mxu0 0.0
        %1927 = vmatprep.subr.mxu0 0.0
        %1928 = vmatpush1.msra.mxu0 0.0
        %1929 = vmatprep.subr.mxu0 0.0
        %1930 = vmatpush1.msra.mxu0 0.0
        %1931 = vmatprep.subr.mxu0 0.0
        %1932 = vmatpush1.msra.mxu0 0.0
        %1933 = vmatprep.subr.mxu0 0.0
        %1934 = vmatpush1.msra.mxu0 0.0
        %1935 = vmatprep.subr.mxu0 0.0
        %1936 = vmatpush1.msra.mxu0 0.0
        %1937 = vmatprep.subr.mxu0 0.0
        %1938 = vmatpush1.msra.mxu0 0.0
        %1939 = vmatprep.subr.mxu0 0.0
        %1940 = vmatpush1.msra.mxu0 0.0
        %1941 = vmatprep.subr.mxu0 0.0
        %1942 = vmatpush1.msra.mxu0 0.0
        %1943 = vmatprep.subr.mxu0 0.0
        %1944 = vmatpush1.msra.mxu0 0.0
        %1945 = vmatprep.subr.mxu0 0.0
        %1946 = vmatpush1.msra.mxu0 0.0
        %1947 = vmatprep.subr.mxu0 0.0
        %1948 = vmatpush1.msra.mxu0 0.0
        %1949 = vmatprep.subr.mxu0 0.0
        %1950 = vmatpush1.msra.mxu0 0.0
        %1951 = vmatprep.subr.mxu0 0.0
        %1952 = vmatpush1.msra.mxu0 0.0
        %1953 = vmatprep.subr.mxu0 0.0
        %1954 = vmatpush1.msra.mxu0 0.0
        %1955 = vmatprep.subr.mxu0 0.0
        %1956 = vmatpush1.msra.mxu0 0.0
        %1957 = vmatprep.mubr.f32.mxu0 0.0
        %1958 = vmatmul.mubr.f32.gmra.mrb[0].mxu0 %v1846
        %v1959 = vpop.f32.mrb[0].mxu0
        %v1960 = vadd.f32 %v1843, %v1959
        %v1961 = vpop.f32.mrb[0].mxu0
        %1962 = vmatprep.mubr.f32.mxu0 0.0
        %1963 = vmatmul.mubr.f32.gmra.mrb[0].mxu0 %v1849
        %v1964 = vpop.f32.mrb[0].mxu0
        %v1965 = vadd.f32 %v1843, %v1964
        %v1966 = vpop.f32.mrb[0].mxu0
        %1967 = vmatprep.mubr.f32.mxu0 0.0
        %1968 = vmatmul.mubr.f32.gmra.mrb[0].mxu0 %v1852
        %v1969 = vpop.f32.mrb[0].mxu0
        %v1970 = vadd.f32 %v1843, %v1969
        %v1971 = vpop.f32.mrb[0].mxu0
        %1972 = vmatprep.mubr.f32.mxu0 0.0
        %1973 = vmatmul.mubr.f32.gmra.mrb[0].mxu0 %v1855
        %v1974 = vpop.f32.mrb[0].mxu0
        %v1975 = vadd.f32 %v1843, %v1974
        %v1976 = vpop.f32.mrb[0].mxu0
        %1977 = vmatprep.mubr.f32.mxu0 0.0
        %1978 = vmatmul.mubr.f32.gmra.mrb[0].mxu0 %v1858
        %v1979 = vpop.f32.mrb[0].mxu0
        %v1980 = vadd.f32 %v1843, %v1979
        %v1981 = vpop.f32.mrb[0].mxu0
        %1982 = vmatprep.mubr.f32.mxu0 0.0
        %1983 = vmatmul.mubr.f32.gmra.mrb[0].mxu0 %v1861
        %v1984 = vpop.f32.mrb[0].mxu0
        %v1985 = vadd.f32 %v1843, %v1984
        %v1986 = vpop.f32.mrb[0].mxu0
        %1987 = vmatprep.mubr.f32.mxu0 0.0
        %1988 = vmatmul.mubr.f32.gmra.mrb[0].mxu0 %v1864
        %v1989 = vpop.f32.mrb[0].mxu0
        %v1990 = vadd.f32 %v1843, %v1989
        %v1991 = vpop.f32.mrb[0].mxu0
        %1992 = vmatprep.mubr.f32.mxu0 0.0
        %1993 = vmatmul.mubr.f32.gmra.mrb[0].mxu0 %v1867
        %v1994 = vpop.f32.mrb[0].mxu0
        %v1995 = vadd.f32 %v1843, %v1994
        %v1996 = vpop.f32.mrb[0].mxu0
        %1997 = vmatprep.mubr.f32.mxu0 0.0
        %1998 = vmatmul.mubr.f32.gmra.mrb[0].mxu0 %v1870
        %v1999 = vpop.f32.mrb[0].mxu0
        %v2000 = vadd.f32 %v1843, %v1999
        %v2001 = vpop.f32.mrb[0].mxu0
        %2002 = vmatprep.mubr.f32.mxu0 0.0
        %2003 = vmatmul.mubr.f32.gmra.mrb[0].mxu0 %v1873
        %v2004 = vpop.f32.mrb[0].mxu0
        %v2005 = vadd.f32 %v1843, %v2004
        %v2006 = vpop.f32.mrb[0].mxu0
        %2007 = vmatprep.mubr.f32.mxu0 0.0
        %2008 = vmatmul.mubr.f32.gmra.mrb[0].mxu0 %v1876
        %v2009 = vpop.f32.mrb[0].mxu0
        %v2010 = vadd.f32 %v1843, %v2009
        %v2011 = vpop.f32.mrb[0].mxu0
        %2012 = vmatprep.mubr.f32.mxu0 0.0
        %2013 = vmatmul.mubr.f32.gmra.mrb[0].mxu0 %v1879
        %v2014 = vpop.f32.mrb[0].mxu0
        %v2015 = vadd.f32 %v1843, %v2014
        %v2016 = vpop.f32.mrb[0].mxu0
        %2017 = vmatprep.mubr.f32.mxu0 0.0
        %2018 = vmatmul.mubr.f32.gmra.mrb[0].mxu0 %v1882
        %v2019 = vpop.f32.mrb[0].mxu0
        %v2020 = vadd.f32 %v1843, %v2019
        %v2021 = vpop.f32.mrb[0].mxu0
        %2022 = vmatprep.mubr.f32.mxu0 0.0
        %2023 = vmatmul.mubr.f32.gmra.mrb[0].mxu0 %v1885
        %v2024 = vpop.f32.mrb[0].mxu0
        %v2025 = vadd.f32 %v1843, %v2024
        %v2026 = vpop.f32.mrb[0].mxu0
        %2027 = vmatprep.mubr.f32.mxu0 0.0
        %2028 = vmatmul.mubr.f32.gmra.mrb[0].mxu0 %v1888
        %v2029 = vpop.f32.mrb[0].mxu0
        %v2030 = vadd.f32 %v1843, %v2029
        %v2031 = vpop.f32.mrb[0].mxu0
        %2032 = vmatprep.mubr.f32.mxu0 0.0
        %2033 = vmatmul.mubr.f32.gmra.mrb[0].mxu0 %v1891
        %v2034 = vpop.f32.mrb[0].mxu0
        %v2035 = vadd.f32 %v1843, %v2034
        %v2036 = vpop.f32.mrb[0].mxu0
        %2037 = vdwg.mxu0
        %v2038 = vmax.f32 %v1960, 0.0
        %v2039 = vmax.f32 %v1965, 0.0
        %v2040 = vmax.f32 %v1970, 0.0
        %v2041 = vmax.f32 %v1975, 0.0
        %v2042 = vmax.f32 %v1980, 0.0
        %v2043 = vmax.f32 %v1985, 0.0
        %v2044 = vmax.f32 %v1990, 0.0
        %v2045 = vmax.f32 %v1995, 0.0
        %v2046 = vmax.f32 %v2000, 0.0
        %v2047 = vmax.f32 %v2005, 0.0
        %v2048 = vmax.f32 %v2010, 0.0
        %v2049 = vmax.f32 %v2015, 0.0
        %v2050 = vmax.f32 %v2020, 0.0
        %v2051 = vmax.f32 %v2025, 0.0
        %v2052 = vmax.f32 %v2030, 0.0
        %v2053 = vmax.f32 %v2035, 0.0
        %v2054 = vadd.f32 %v2038, %v297
        %v2055 = vadd.f32 %v2039, %v298
        %v2056 = vadd.f32 %v2040, %v299
        %v2057 = vadd.f32 %v2041, %v300
        %v2058 = vadd.f32 %v2042, %v301
        %v2059 = vadd.f32 %v2043, %v302
        %v2060 = vadd.f32 %v2044, %v303
        %v2061 = vadd.f32 %v2045, %v304
        %v2062 = vadd.f32 %v2046, %v305
        %v2063 = vadd.f32 %v2047, %v306
        %v2064 = vadd.f32 %v2048, %v307
        %v2065 = vadd.f32 %v2049, %v308
        %v2066 = vadd.f32 %v2050, %v309
        %v2067 = vadd.f32 %v2051, %v310
        %v2068 = vadd.f32 %v2052, %v311
        %v2069 = vadd.f32 %v2053, %v312
        %2070 = vst [vmem:[%s285] sm:$0xff] %v2054
        %2071 = vst [vmem:[%s285 + $0x8] sm:$0xff] %v2055
        %2072 = vst [vmem:[%s285 + $0x10] sm:$0xff] %v2056
        %2073 = vst [vmem:[%s285 + $0x18] sm:$0xff] %v2057
        %2074 = vst [vmem:[%s285 + $0x20] sm:$0xff] %v2058
        %2075 = vst [vmem:[%s285 + $0x28] sm:$0xff] %v2059
        %2076 = vst [vmem:[%s285 + $0x30] sm:$0xff] %v2060
        %2077 = vst [vmem:[%s285 + $0x38] sm:$0xff] %v2061
        %2078 = vst [vmem:[%s285 + $0x40] sm:$0xff] %v2062
        %2079 = vst [vmem:[%s285 + $0x48] sm:$0xff] %v2063
        %2080 = vst [vmem:[%s285 + $0x50] sm:$0xff] %v2064
        %2081 = vst [vmem:[%s285 + $0x58] sm:$0xff] %v2065
        %2082 = vst [vmem:[%s285 + $0x60] sm:$0xff] %v2066
        %2083 = vst [vmem:[%s285 + $0x68] sm:$0xff] %v2067
        %2084 = vst [vmem:[%s285 + $0x70] sm:$0xff] %v2068
        %2085 = vst [vmem:[%s285 + $0x78] sm:$0xff] %v2069
        %s2086 = sand.u32 %s195, 1
        %s2087 = scalar_lea.sflag [#allocation5], %s2086
        %s2088 = sand.u32 %s195, 1
        %s2089 = smul.addr %s2088, 128
        %s2090 = scalar_lea.vmem [#allocation4], %s2089
        // Predicated region
        $region49: #{bottleneck_forward.1} parent=47 // pred_check
          %p2091 = pneg %p205
        $region50: #{bottleneck_forward.1} parent=47 // pred_check_branch
          %2093 = sbr.rel (%p2091) target = $region52
        $region51: #{bottleneck_forward.1} parent=47 // pred_region
          %s2094 = smul.u32 8, %s26
          %s2096 = ssub.s32 2048, 2048
          %2097 = vsyncadd %s2087, %s2096
          %s2098 = smul.addr %s2094, 2
          %s2099 = smul.addr %s25, 32
          %s2100 = sadd.s32 %s2098, %s2099
          %s2101 = smul.addr %s2100, 128
          %s2102 = scalar_lea.hbm %s7, %s2101
          %s2103 = sshll.u32 %s2090, 4
          %s2104 = int_to_ptr.vmem [resolvable:$true] %s2103
          %2109 = dma.vmem_to_hbm [thread:$0]  %s2104, 2048, %s2102, %s2087, 128, 128, 8
        $region52: #{bottleneck_forward.1} parent=47 // pred_fallthru
          _
      $region48: #{bottleneck_forward.1} parent=5 // pred_fallthru
        _
      %p2110 = scmp.le.s32.totalorder 2, %s16
      // Predicated region
      $region53: #{bottleneck_forward.1} parent=5 // pred_check
        %p2111 = pneg %p2110
      $region54: #{bottleneck_forward.1} parent=5 // pred_check_branch
        %2113 = sbr.rel (%p2111) target = $region56
      $region55: #{bottleneck_forward.1} parent=5 // pred_region
        %s2114 = ssub.s32 %s16, 2
        // Predicated region
        $region57: #{bottleneck_forward.1} parent=55 // pred_check
          %p2115 = pneg %p211
        $region58: #{bottleneck_forward.1} parent=55 // pred_check_branch
          %2117 = sbr.rel (%p2115) target = $region60
        $region59: #{bottleneck_forward.1} parent=55 // pred_region
          %s2118 = sand.u32 %s196, 1
          %s2119 = scalar_lea.sflag [#allocation5], %s2118
          %s2120 = sand.u32 %s196, 1
          %s2121 = smul.addr %s2120, 128
          %s2122 = scalar_lea.vmem [#allocation4], %s2121
          %2123 = dma.done %s2119, 2048
        $region60: #{bottleneck_forward.1} parent=55 // pred_fallthru
          _
      $region56: #{bottleneck_forward.1} parent=5 // pred_fallthru
        _
    $region6: #{bottleneck_forward.1} parent=1 // loop_footer
      %s20 = sadd.s32 1, %s16
    $region7: #{bottleneck_forward.1} parent=1 // loop_footer_branch
      %15 = sbr.rel target = $region3
    $region8: #{bottleneck_forward.1} parent=1 // loop_exit
      _
    %2124 = vsyncpa [#allocation5], 1
    %s2125 = scalar_lea.sflag [#allocation5], 1
    %2126 = vsyncpa %s2125, 1

</llo_original>
